<compile_context>
chip_gen: v7x
topology: tpu7x:2x2x1
jax: 0.10.0
libtpu: 0.0.40
codegen_flags: <defaults>
</compile_context>

<pallas_src>
import math
import numpy as np

import jax
import jax.numpy as jnp
from jax import lax
from jax.experimental import pallas as pl
from jax.experimental.pallas import tpu as pltpu

# ----------------------------- config -------------------------------------
N = 16              # nodes (2 graphs x 8 nodes)
G = 2               # graphs
H = 32              # hidden_dim
K = 10              # num_noise_level
EDGE_TYPES = 3      # config.model.order + 1
STEPS = 2           # config.train.steps
SIGMA_BEGIN, SIGMA_END = 10.0, 0.01

# per-node slab column layout (lanes)
_C_X = 0                    # node features            [0, H)
_C_POS = H                  # positions                [H, H+3)
_C_SIG = H + 3              # used_sigma               [H+3]
_C_ISIG = H + 4             # exact 1/used_sigma       [H+4]
_C_NOI = H + 5              # perturb noise            [H+5, H+5+3*STEPS)
_C_A = 48                   # weighted adjacency A     [48, 48+N)
_C_S = 64                   # same-graph operator S    [64, 64+N)
_C_C = 80                   # centering operator C     [80, 80+N)
ND_W = 128


def _silu(x):
    return x * jax.nn.sigmoid(x)


def _dot(a, b):
    return jnp.dot(a, b, preferred_element_type=jnp.float32)


# ----------------------------- fused kernel --------------------------------
def fused_kernel(nd_ref, w_ref, aux_ref, out_ref):
    """Whole forward: perturb (STEPS force-target steps) -> denoise target ->
    rep_model/node_dec/pool/graph_dec on clean & perturbed -> noise_pred head
    -> MSE + CE losses.  Single block, everything stays in VMEM."""
    nd = nd_ref[...]               # [N, 128]  per-node slab
    w = w_ref[...]                 # [H, 8H]   lane-dense weight slab
    aux = aux_ref[...]             # [8, 128]  biases / M / labels

    x = nd[:, _C_X:_C_X + H]                       # [N, H]
    pos = nd[:, _C_POS:_C_POS + 3]                 # [N, 3]
    used_sigma = nd[:, _C_SIG:_C_SIG + 1]          # [N, 1]
    inv_sigma = nd[:, _C_ISIG:_C_ISIG + 1]         # [N, 1] exact reciprocal
    noise_all = nd[:, _C_NOI:_C_NOI + 3 * STEPS]   # [N, 3*STEPS]
    A = nd[:, _C_A:_C_A + N]                       # [N, N] weighted adjacency
    S = nd[:, _C_S:_C_S + N]                       # [N, N] same-graph sum+bcast
    Cc = nd[:, _C_C:_C_C + N]                      # [N, N] per-graph centering

    # lane-dense weight slab slices (static, zero-cost)
    Wsn = w[:, 0:2 * H]            # [H, 2H]  (w_self | w_nbr) fused
    w1 = w[:, 2 * H:3 * H]
    w2 = w[:, 3 * H:4 * H]
    wg1 = w[:, 4 * H:5 * H]
    wn1a = w[:, 5 * H:6 * H]       # noise_pred Linear(2H,H): rows for rep_ori
    wn1b = w[:, 6 * H:7 * H]       #                          rows for rep_noise
    wn2p = w[:, 7 * H:8 * H]       # Linear(H,K) zero-padded to [H,H]

    b_r = aux[0:1, 0:H]
    b1 = aux[0:1, H:2 * H]
    b2 = aux[0:1, 2 * H:3 * H]
    bg1 = aux[0:1, 3 * H:4 * H]
    bn1 = aux[1:2, 0:H]
    w_coef = aux[1:2, H:2 * H]
    wg2 = aux[1:2, 2 * H:3 * H]
    bg2 = aux[1:2, 3 * H:3 * H + 1]
    bn2 = aux[1:2, 3 * H + 1:3 * H + 1 + K]
    M = aux[2:2 + G, 0:N]                          # [G, N] membership (sums)
    labels = aux[4:4 + G, 0:K]                     # [G, K] one-hot noise level

    def force_target(pp, p):
        """get_force_target: tar = -2*(pp_c @ ptp - p_c @ otp).
        Centering and per-graph sum+broadcast are single MXU matmuls with the
        host-precomputed operators C and S; second moments are batched along
        lanes into one [N,18] operand."""
        cent = _dot(Cc, jnp.concatenate([p, pp], axis=1))          # [N, 6]
        p_c = cent[:, 0:3]
        pp_c = cent[:, 3:6]
        prods = jnp.concatenate(
            [pp_c[:, 0:1] * pp_c, pp_c[:, 1:2] * pp_c, pp_c[:, 2:3] * pp_c,
             p_c[:, 0:1] * pp_c, p_c[:, 1:2] * pp_c, p_c[:, 2:3] * pp_c],
            axis=1)                                                # [N, 18]
        mom = _dot(S, prods)                                       # [N, 18]
        tar = (pp_c[:, 0:1] * mom[:, 0:3]
               + pp_c[:, 1:2] * mom[:, 3:6]
               + pp_c[:, 2:3] * mom[:, 6:9]
               - p_c[:, 0:1] * mom[:, 9:12]
               - p_c[:, 1:2] * mom[:, 12:15]
               - p_c[:, 2:3] * mom[:, 15:18])
        return -2.0 * tar

    # ---- perturb (noise pre-drawn outside, consumed from the node slab) ------
    pos_p = pos
    for t in range(1, STEPS + 1):                  # STEPS is tiny: unrolled
        alpha = 0.5 ** t
        s = force_target(pos_p, pos)
        nz = noise_all[:, 3 * (t - 1):3 * t]
        pos_p = pos_p + alpha * s + nz * (math.sqrt(2.0 * alpha) * used_sigma)

    target = force_target(pos_p, pos) * inv_sigma                  # [N, 3]

    # ---- rep_model (position-dependent, equivariant) + node_dec + pooling ----
    xw = _dot(x, Wsn)                              # one fused [N,H]x[H,2H]
    xs = xw[:, 0:H]
    xn = xw[:, H:2 * H]
    ones_col = jnp.ones((N, 1), jnp.float32)

    def egnn_half(p_h):
        # radial gate from per-graph-centered positions (translation invariant)
        p_c = _dot(Cc, p_h)                                        # [N, 3]
        r2 = jnp.sum(p_c * p_c, axis=1, keepdims=True)             # [N, 1]
        gate = jnp.exp(-r2)
        # one matmul gives message aggregate, position aggregate and degree
        src = jnp.concatenate([xn, p_h, ones_col], axis=1) * gate  # [N, H+4]
        agg = _dot(A, src)                                         # [N, H+4]
        msg = agg[:, 0:H]
        apos = agg[:, H:H + 3]
        deg = agg[:, H + 3:H + 4]
        h0 = _silu(xs + msg + b_r)                                 # [N, H]
        coef = jnp.tanh(jnp.sum(h0 * w_coef, axis=1, keepdims=True))
        p_out = p_h + coef * (apos - deg * p_h)                    # equivariant
        return h0, p_out

    h0_c, _ = egnn_half(pos)                       # clean graph
    h0_p, pred_pos = egnn_half(pos_p)              # perturbed graph

    # node_dec on the sublane-stacked (clean | perturbed) features
    h0_all = jnp.concatenate([h0_c, h0_p], axis=0)                 # [2N, H]
    h = _silu(_dot(h0_all, w1) + b1)
    h = _dot(h, w2) + b2                                           # [2N, H]

    # rep pooling: one matmul yields [rep_ori | rep_noise] directly
    h_cat = jnp.concatenate([h[0:N, :], h[N:2 * N, :]], axis=1)    # [N, 2H]
    rep_cat = _dot(M, h_cat)                                       # [G, 2H]
    rep_noise = rep_cat[:, H:2 * H]

    # graph_dec energy of the perturbed graph (diagnostic lane; get_E in full)
    g1 = _silu(_dot(rep_noise, wg1) + bg1)
    energy = jnp.sum(g1 * wg2, axis=1, keepdims=True) + bg2        # [G, 1]

    # ---- denoise loss (pred_mode == 'force') ----------------------------------
    pred_noise = (pred_pos - pos_p) * inv_sigma
    diff = pred_noise - target
    # scatter_add per graph then mean over graphs == total sum / num_graphs
    loss_denoise = jnp.sum(diff * diff, keepdims=True) * (1.0 / G)  # [1, 1]

    # ---- noise-level prediction loss (single [G,2H]x[2H,H] dot + CE) ----------
    wn1_full = jnp.concatenate([wn1a, wn1b], axis=0)               # [2H, H]
    hn = _silu(_dot(rep_cat, wn1_full) + bn1)                      # [G, H]
    logits = _dot(hn, wn2p)[:, 0:K] + bn2                          # [G, K]
    mx = jnp.max(logits, axis=1, keepdims=True)
    lse = mx + jnp.log(jnp.sum(jnp.exp(logits - mx), axis=1, keepdims=True))
    picked = jnp.sum(labels * logits, axis=1, keepdims=True)
    loss_pred = jnp.sum(lse - picked, keepdims=True) * (1.0 / G)   # [1, 1]

    # ---- lane-dense output slab: one full unmasked (8,128) store ---------------
    lane = lax.broadcasted_iota(jnp.int32, (8, 128), 1)
    e_diag = jnp.sum(energy, keepdims=True)
    out_ref[...] = jnp.where(lane == 0, loss_denoise,
                   jnp.where(lane == 1, loss_pred,
                   jnp.where(lane == 2, e_diag, 0.0)))


# ----------------------------- wrappers -------------------------------------
_VMEM = pl.BlockSpec(memory_space=pltpu.MemorySpace.VMEM)


def pack_inputs(params, node_feature, pos, used_sigmas, noise_l, A, S, Cmat,
                M, labels):
    """3 lane-dense slabs: per-node [N,128], weights [H,8H], aux [8,128]."""
    nd = jnp.zeros((N, ND_W), jnp.float32)
    nd = nd.at[:, _C_X:_C_X + H].set(node_feature)
    nd = nd.at[:, _C_POS:_C_POS + 3].set(pos)
    nd = nd.at[:, _C_SIG:_C_SIG + 1].set(used_sigmas)
    nd = nd.at[:, _C_ISIG:_C_ISIG + 1].set(1.0 / used_sigmas)     # exact
    nd = nd.at[:, _C_NOI:_C_NOI + 3 * STEPS].set(noise_l)
    nd = nd.at[:, _C_A:_C_A + N].set(A)
    nd = nd.at[:, _C_S:_C_S + N].set(S)
    nd = nd.at[:, _C_C:_C_C + N].set(Cmat)

    wslab = jnp.concatenate(
        [params['w_self'], params['w_nbr'], params['w1'], params['w2'],
         params['wg1'], params['wn1'][:H, :], params['wn1'][H:, :],
         jnp.pad(params['wn2'], ((0, 0), (0, H - K)))], axis=1)    # [H, 8H]

    aux = jnp.zeros((8, 128), jnp.float32)
    aux = aux.at[0, 0:H].set(params['b_r'])
    aux = aux.at[0, H:2 * H].set(params['b1'])
    aux = aux.at[0, 2 * H:3 * H].set(params['b2'])
    aux = aux.at[0, 3 * H:4 * H].set(params['bg1'])
    aux = aux.at[1, 0:H].set(params['bn1'])
    aux = aux.at[1, H:2 * H].set(params['w_coef'])
    aux = aux.at[1, 2 * H:3 * H].set(params['wg2'])
    aux = aux.at[1, 3 * H:3 * H + 1].set(params['bg2'])
    aux = aux.at[1, 3 * H + 1:3 * H + 1 + K].set(params['bn2'])
    aux = aux.at[2:2 + G, 0:N].set(M)
    aux = aux.at[4:4 + G, 0:K].set(labels)
    return nd, wslab, aux


def forward(params, node_feature, pos, edge_index, edge_type, node2graph, key):
    # graph membership -> segment operators (host precompute; replaces all
    # in-kernel masked reductions / divides)
    MT = jax.nn.one_hot(node2graph, G, dtype=jnp.float32)          # [N, G]
    M = MT.T                                                       # [G, N]
    cnt = jnp.sum(MT, axis=0)                                      # [G]
    Mn = M / cnt[:, None]                                          # mean pooling
    S = MT @ M                                                     # same-graph sum+bcast
    Cmat = jnp.eye(N, dtype=jnp.float32) - MT @ Mn                 # per-graph centering

    # gen_edge_onehot + dense weighted adjacency (single [N,N] copy only)
    edge_attr = jax.nn.one_hot(edge_type, EDGE_TYPES, dtype=jnp.float32)
    ew = edge_attr @ params['type_w']                              # [E]
    A = jnp.zeros((N, N), jnp.float32).at[edge_index[0], edge_index[1]].add(ew)

    # sigmas / noise level per graph -> per node
    sigmas = jnp.asarray(
        np.exp(np.linspace(np.log(SIGMA_BEGIN), np.log(SIGMA_END), K)),
        dtype=jnp.float32)
    key, knl, kpert = jax.random.split(key, 3)
    noise_level = jax.random.randint(knl, (G,), 0, K)
    used_sigmas = sigmas[noise_level][node2graph][:, None]         # [N, 1]
    labels = jax.nn.one_hot(noise_level, K, dtype=jnp.float32)     # [G, K]

    # pre-generate ALL perturbation noise in one RNG call, consumed in-kernel
    noise = jax.random.normal(kpert, (STEPS, N, 3), jnp.float32)
    noise_l = jnp.transpose(noise, (1, 0, 2)).reshape(N, 3 * STEPS)

    nd, wslab, aux = pack_inputs(params, node_feature, pos, used_sigmas,
                                 noise_l, A, S, Cmat, M, labels)

    out = pl.pallas_call(
        fused_kernel,
        out_shape=jax.ShapeDtypeStruct((8, 128), jnp.float32),
        in_specs=[_VMEM, _VMEM, _VMEM],
        out_specs=_VMEM,
        cost_estimate=pl.CostEstimate(flops=300_000, transcendentals=4_096,
                                      bytes_accessed=50_000),
    )(nd, wslab, aux)
    return out[0, 0], out[0, 1]


# ----------------------------- params / data -------------------------------
def init_params(key):
    ks = jax.random.split(key, 10)

    def lin(k, fi, fo):
        return jax.random.normal(k, (fi, fo), jnp.float32) / math.sqrt(fi)

    return {
        # synthetic rep_model (original takes an arbitrary `rep_model`)
        'w_self': lin(ks[0], H, H),
        'w_nbr': lin(ks[1], H, H),
        'b_r': jnp.zeros((H,), jnp.float32),
        'w_coef': lin(ks[2], H, 1)[:, 0],          # [H]
        # node_dec
        'w1': lin(ks[3], H, H), 'b1': jnp.zeros((H,), jnp.float32),
        'w2': lin(ks[4], H, H), 'b2': jnp.zeros((H,), jnp.float32),
        # graph_dec
        'wg1': lin(ks[5], H, H), 'bg1': jnp.zeros((H,), jnp.float32),
        'wg2': lin(ks[6], H, 1)[:, 0],             # [H]
        'bg2': jnp.zeros((1,), jnp.float32),
        # noise_pred head: Linear(2H,H) -> SiLU -> Linear(H,K)
        'wn1': lin(ks[7], 2 * H, H), 'bn1': jnp.zeros((H,), jnp.float32),
        'wn2': lin(ks[8], H, K), 'bn2': jnp.zeros((K,), jnp.float32),
        # per-edge-type adjacency weight (consumes gen_edge_onehot output)
        'type_w': 1.0 + 0.1 * jax.random.normal(ks[9], (EDGE_TYPES,), jnp.float32),
    }


if __name__ == "__main__":
    key = jax.random.PRNGKey(0)
    kp, kx, kpos, ket, kfwd = jax.random.split(key, 5)

    params = init_params(kp)

    node_feature = jax.random.normal(kx, (N, H), jnp.float32)
    pos = jax.random.normal(kpos, (N, 3), jnp.float32)
    node2graph = jnp.repeat(jnp.arange(G, dtype=jnp.int32), N // G)

    # ring graph within each of the G components, both directions
    rows, cols = [], []
    npg = N // G
    for g in range(G):
        off = g * npg
        for i in range(npg):
            rows += [off + i, off + (i + 1) % npg]
            cols += [off + (i + 1) % npg, off + i]
    edge_index = jnp.asarray(np.stack([rows, cols]), dtype=jnp.int32)   # [2, 32]
    edge_type = jax.random.randint(ket, (edge_index.shape[1],), 0, EDGE_TYPES)

    fwd = jax.jit(forward)
    loss_denoise, loss_pred_noise = fwd(
        params, node_feature, pos, edge_index, edge_type, node2graph, kfwd)
    jax.block_until_ready((loss_denoise, loss_pred_noise))
    assert jnp.isfinite(loss_denoise) and jnp.isfinite(loss_pred_noise)
    print("KERNEL_OK")
</pallas_src>

<mosaic_0001>
module attributes {stable_mosaic.version = 11 : i64} {
  func.func private @main(%arg0: i32) attributes {dimension_semantics = [#tpu.dimension_semantics<core_parallel>], iteration_bounds = array<i64: 2>, tpu.core_type = #tpu.core_type<sc_scalar_subcore>, window_params = []} {
    return
  }
}

module attributes {stable_mosaic.version = 11 : i64} {
  func.func private @main(%arg0: i32) attributes {dimension_semantics = [#tpu.dimension_semantics<core_parallel>], iteration_bounds = array<i64: 2>, tpu.core_type = #tpu.core_type<sc_scalar_subcore>, window_params = []} {
    return
  }
}

module attributes {stable_mosaic.version = 11 : i64} {
  func.func @fused_kernel(%arg0: memref<16x128xf32, #tpu.memory_space<vmem>>, %arg1: memref<32x256xf32, #tpu.memory_space<vmem>>, %arg2: memref<8x128xf32, #tpu.memory_space<vmem>>, %arg3: memref<8x128xf32, #tpu.memory_space<vmem>>) attributes {dimension_semantics = [], scalar_prefetch = 0 : i64, scratch_operands = 0 : i64, tpu.core_type = #tpu.core_type<tc>} {
    %c0 = arith.constant 0 : index
    %c0_0 = arith.constant 0 : index
    %0 = vector.load %arg0[%c0, %c0_0] : memref<16x128xf32, #tpu.memory_space<vmem>>, vector<16x128xf32>
    %c0_1 = arith.constant 0 : index
    %c0_2 = arith.constant 0 : index
    %1 = vector.load %arg1[%c0_1, %c0_2] : memref<32x256xf32, #tpu.memory_space<vmem>>, vector<32x256xf32>
    %c0_3 = arith.constant 0 : index
    %c0_4 = arith.constant 0 : index
    %2 = vector.load %arg2[%c0_3, %c0_4] : memref<8x128xf32, #tpu.memory_space<vmem>>, vector<8x128xf32>
    %3 = vector.extract_strided_slice %0 {offsets = [0, 0], sizes = [16, 32], strides = [1, 1]} : vector<16x128xf32> to vector<16x32xf32>
    %4 = vector.extract_strided_slice %0 {offsets = [0, 32], sizes = [16, 3], strides = [1, 1]} : vector<16x128xf32> to vector<16x3xf32>
    %5 = vector.extract_strided_slice %0 {offsets = [0, 35], sizes = [16, 1], strides = [1, 1]} : vector<16x128xf32> to vector<16x1xf32>
    %6 = vector.extract_strided_slice %0 {offsets = [0, 36], sizes = [16, 1], strides = [1, 1]} : vector<16x128xf32> to vector<16x1xf32>
    %7 = vector.extract_strided_slice %0 {offsets = [0, 37], sizes = [16, 6], strides = [1, 1]} : vector<16x128xf32> to vector<16x6xf32>
    %8 = vector.extract_strided_slice %0 {offsets = [0, 48], sizes = [16, 16], strides = [1, 1]} : vector<16x128xf32> to vector<16x16xf32>
    %9 = vector.extract_strided_slice %0 {offsets = [0, 64], sizes = [16, 16], strides = [1, 1]} : vector<16x128xf32> to vector<16x16xf32>
    %10 = vector.extract_strided_slice %0 {offsets = [0, 80], sizes = [16, 16], strides = [1, 1]} : vector<16x128xf32> to vector<16x16xf32>
    %11 = vector.extract_strided_slice %1 {offsets = [0, 0], sizes = [32, 64], strides = [1, 1]} : vector<32x256xf32> to vector<32x64xf32>
    %12 = vector.extract_strided_slice %1 {offsets = [0, 64], sizes = [32, 32], strides = [1, 1]} : vector<32x256xf32> to vector<32x32xf32>
    %13 = vector.extract_strided_slice %1 {offsets = [0, 96], sizes = [32, 32], strides = [1, 1]} : vector<32x256xf32> to vector<32x32xf32>
    %14 = vector.extract_strided_slice %1 {offsets = [0, 128], sizes = [32, 32], strides = [1, 1]} : vector<32x256xf32> to vector<32x32xf32>
    %15 = vector.extract_strided_slice %1 {offsets = [0, 160], sizes = [32, 32], strides = [1, 1]} : vector<32x256xf32> to vector<32x32xf32>
    %16 = vector.extract_strided_slice %1 {offsets = [0, 192], sizes = [32, 32], strides = [1, 1]} : vector<32x256xf32> to vector<32x32xf32>
    %17 = vector.extract_strided_slice %1 {offsets = [0, 224], sizes = [32, 32], strides = [1, 1]} : vector<32x256xf32> to vector<32x32xf32>
    %18 = vector.extract_strided_slice %2 {offsets = [0, 0], sizes = [1, 32], strides = [1, 1]} : vector<8x128xf32> to vector<1x32xf32>
    %19 = vector.extract_strided_slice %2 {offsets = [0, 32], sizes = [1, 32], strides = [1, 1]} : vector<8x128xf32> to vector<1x32xf32>
    %20 = vector.extract_strided_slice %2 {offsets = [0, 64], sizes = [1, 32], strides = [1, 1]} : vector<8x128xf32> to vector<1x32xf32>
    %21 = vector.extract_strided_slice %2 {offsets = [0, 96], sizes = [1, 32], strides = [1, 1]} : vector<8x128xf32> to vector<1x32xf32>
    %22 = vector.extract_strided_slice %2 {offsets = [1, 0], sizes = [1, 32], strides = [1, 1]} : vector<8x128xf32> to vector<1x32xf32>
    %23 = vector.extract_strided_slice %2 {offsets = [1, 32], sizes = [1, 32], strides = [1, 1]} : vector<8x128xf32> to vector<1x32xf32>
    %24 = vector.extract_strided_slice %2 {offsets = [1, 64], sizes = [1, 32], strides = [1, 1]} : vector<8x128xf32> to vector<1x32xf32>
    %25 = vector.extract_strided_slice %2 {offsets = [1, 96], sizes = [1, 1], strides = [1, 1]} : vector<8x128xf32> to vector<1x1xf32>
    %26 = vector.extract_strided_slice %2 {offsets = [1, 97], sizes = [1, 10], strides = [1, 1]} : vector<8x128xf32> to vector<1x10xf32>
    %27 = vector.extract_strided_slice %2 {offsets = [2, 0], sizes = [2, 16], strides = [1, 1]} : vector<8x128xf32> to vector<2x16xf32>
    %28 = vector.extract_strided_slice %2 {offsets = [4, 0], sizes = [2, 10], strides = [1, 1]} : vector<8x128xf32> to vector<2x10xf32>
    %29 = tpu.concatenate %4, %4 in 1 : vector<16x3xf32>, vector<16x3xf32> -> vector<16x6xf32>
    %cst = arith.constant dense<0.000000e+00> : vector<16x6xf32>
    %30 = tpu.matmul %10, %29, %cst {dimension_numbers = #tpu.dot_dimension_numbers<[1], [0], [0], [1], [0, 0, 1, 1], [], []>} : vector<16x16xf32>, vector<16x6xf32>, vector<16x6xf32> -> vector<16x6xf32>
    %31 = vector.extract_strided_slice %30 {offsets = [0, 0], sizes = [16, 3], strides = [1, 1]} : vector<16x6xf32> to vector<16x3xf32>
    %32 = vector.extract_strided_slice %30 {offsets = [0, 3], sizes = [16, 3], strides = [1, 1]} : vector<16x6xf32> to vector<16x3xf32>
    %33 = vector.extract_strided_slice %32 {offsets = [0, 0], sizes = [16, 1], strides = [1, 1]} : vector<16x3xf32> to vector<16x1xf32>
    %34 = vector.broadcast %33 : vector<16x1xf32> to vector<16x3xf32>
    %35 = arith.mulf %34, %32 : vector<16x3xf32>
    %36 = vector.extract_strided_slice %32 {offsets = [0, 1], sizes = [16, 1], strides = [1, 1]} : vector<16x3xf32> to vector<16x1xf32>
    %37 = vector.broadcast %36 : vector<16x1xf32> to vector<16x3xf32>
    %38 = arith.mulf %37, %32 : vector<16x3xf32>
    %39 = vector.extract_strided_slice %32 {offsets = [0, 2], sizes = [16, 1], strides = [1, 1]} : vector<16x3xf32> to vector<16x1xf32>
    %40 = vector.broadcast %39 : vector<16x1xf32> to vector<16x3xf32>
    %41 = arith.mulf %40, %32 : vector<16x3xf32>
    %42 = vector.extract_strided_slice %31 {offsets = [0, 0], sizes = [16, 1], strides = [1, 1]} : vector<16x3xf32> to vector<16x1xf32>
    %43 = vector.broadcast %42 : vector<16x1xf32> to vector<16x3xf32>
    %44 = arith.mulf %43, %32 : vector<16x3xf32>
    %45 = vector.extract_strided_slice %31 {offsets = [0, 1], sizes = [16, 1], strides = [1, 1]} : vector<16x3xf32> to vector<16x1xf32>
    %46 = vector.broadcast %45 : vector<16x1xf32> to vector<16x3xf32>
    %47 = arith.mulf %46, %32 : vector<16x3xf32>
    %48 = vector.extract_strided_slice %31 {offsets = [0, 2], sizes = [16, 1], strides = [1, 1]} : vector<16x3xf32> to vector<16x1xf32>
    %49 = vector.broadcast %48 : vector<16x1xf32> to vector<16x3xf32>
    %50 = arith.mulf %49, %32 : vector<16x3xf32>
    %51 = tpu.concatenate %35, %38, %41, %44, %47, %50 in 1 : vector<16x3xf32>, vector<16x3xf32>, vector<16x3xf32>, vector<16x3xf32>, vector<16x3xf32>, vector<16x3xf32> -> vector<16x18xf32>
    %cst_5 = arith.constant dense<0.000000e+00> : vector<16x18xf32>
    %52 = tpu.matmul %9, %51, %cst_5 {dimension_numbers = #tpu.dot_dimension_numbers<[1], [0], [0], [1], [0, 0, 1, 1], [], []>} : vector<16x16xf32>, vector<16x18xf32>, vector<16x18xf32> -> vector<16x18xf32>
    %53 = vector.extract_strided_slice %32 {offsets = [0, 0], sizes = [16, 1], strides = [1, 1]} : vector<16x3xf32> to vector<16x1xf32>
    %54 = vector.extract_strided_slice %52 {offsets = [0, 0], sizes = [16, 3], strides = [1, 1]} : vector<16x18xf32> to vector<16x3xf32>
    %55 = vector.broadcast %53 : vector<16x1xf32> to vector<16x3xf32>
    %56 = arith.mulf %55, %54 : vector<16x3xf32>
    %57 = vector.extract_strided_slice %32 {offsets = [0, 1], sizes = [16, 1], strides = [1, 1]} : vector<16x3xf32> to vector<16x1xf32>
    %58 = vector.extract_strided_slice %52 {offsets = [0, 3], sizes = [16, 3], strides = [1, 1]} : vector<16x18xf32> to vector<16x3xf32>
    %59 = vector.broadcast %57 : vector<16x1xf32> to vector<16x3xf32>
    %60 = arith.mulf %59, %58 : vector<16x3xf32>
    %61 = arith.addf %56, %60 : vector<16x3xf32>
    %62 = vector.extract_strided_slice %32 {offsets = [0, 2], sizes = [16, 1], strides = [1, 1]} : vector<16x3xf32> to vector<16x1xf32>
    %63 = vector.extract_strided_slice %52 {offsets = [0, 6], sizes = [16, 3], strides = [1, 1]} : vector<16x18xf32> to vector<16x3xf32>
    %64 = vector.broadcast %62 : vector<16x1xf32> to vector<16x3xf32>
    %65 = arith.mulf %64, %63 : vector<16x3xf32>
    %66 = arith.addf %61, %65 : vector<16x3xf32>
    %67 = vector.extract_strided_slice %31 {offsets = [0, 0], sizes = [16, 1], strides = [1, 1]} : vector<16x3xf32> to vector<16x1xf32>
    %68 = vector.extract_strided_slice %52 {offsets = [0, 9], sizes = [16, 3], strides = [1, 1]} : vector<16x18xf32> to vector<16x3xf32>
    %69 = vector.broadcast %67 : vector<16x1xf32> to vector<16x3xf32>
    %70 = arith.mulf %69, %68 : vector<16x3xf32>
    %71 = arith.subf %66, %70 : vector<16x3xf32>
    %72 = vector.extract_strided_slice %31 {offsets = [0, 1], sizes = [16, 1], strides = [1, 1]} : vector<16x3xf32> to vector<16x1xf32>
    %73 = vector.extract_strided_slice %52 {offsets = [0, 12], sizes = [16, 3], strides = [1, 1]} : vector<16x18xf32> to vector<16x3xf32>
    %74 = vector.broadcast %72 : vector<16x1xf32> to vector<16x3xf32>
    %75 = arith.mulf %74, %73 : vector<16x3xf32>
    %76 = arith.subf %71, %75 : vector<16x3xf32>
    %77 = vector.extract_strided_slice %31 {offsets = [0, 2], sizes = [16, 1], strides = [1, 1]} : vector<16x3xf32> to vector<16x1xf32>
    %78 = vector.extract_strided_slice %52 {offsets = [0, 15], sizes = [16, 3], strides = [1, 1]} : vector<16x18xf32> to vector<16x3xf32>
    %79 = vector.broadcast %77 : vector<16x1xf32> to vector<16x3xf32>
    %80 = arith.mulf %79, %78 : vector<16x3xf32>
    %81 = arith.subf %76, %80 : vector<16x3xf32>
    %cst_6 = arith.constant -2.000000e+00 : f32
    %82 = vector.broadcast %cst_6 : f32 to vector<16x3xf32>
    %83 = arith.mulf %82, %81 : vector<16x3xf32>
    %84 = vector.extract_strided_slice %7 {offsets = [0, 0], sizes = [16, 3], strides = [1, 1]} : vector<16x6xf32> to vector<16x3xf32>
    %cst_7 = arith.constant 5.000000e-01 : f32
    %85 = vector.broadcast %cst_7 : f32 to vector<16x3xf32>
    %86 = arith.mulf %85, %83 : vector<16x3xf32>
    %87 = arith.addf %4, %86 : vector<16x3xf32>
    %cst_8 = arith.constant 1.000000e+00 : f32
    %88 = vector.broadcast %cst_8 : f32 to vector<16x1xf32>
    %89 = arith.mulf %88, %5 : vector<16x1xf32>
    %90 = vector.broadcast %89 : vector<16x1xf32> to vector<16x3xf32>
    %91 = arith.mulf %84, %90 : vector<16x3xf32>
    %92 = arith.addf %87, %91 : vector<16x3xf32>
    %93 = tpu.concatenate %4, %92 in 1 : vector<16x3xf32>, vector<16x3xf32> -> vector<16x6xf32>
    %cst_9 = arith.constant dense<0.000000e+00> : vector<16x6xf32>
    %94 = tpu.matmul %10, %93, %cst_9 {dimension_numbers = #tpu.dot_dimension_numbers<[1], [0], [0], [1], [0, 0, 1, 1], [], []>} : vector<16x16xf32>, vector<16x6xf32>, vector<16x6xf32> -> vector<16x6xf32>
    %95 = vector.extract_strided_slice %94 {offsets = [0, 0], sizes = [16, 3], strides = [1, 1]} : vector<16x6xf32> to vector<16x3xf32>
    %96 = vector.extract_strided_slice %94 {offsets = [0, 3], sizes = [16, 3], strides = [1, 1]} : vector<16x6xf32> to vector<16x3xf32>
    %97 = vector.extract_strided_slice %96 {offsets = [0, 0], sizes = [16, 1], strides = [1, 1]} : vector<16x3xf32> to vector<16x1xf32>
    %98 = vector.broadcast %97 : vector<16x1xf32> to vector<16x3xf32>
    %99 = arith.mulf %98, %96 : vector<16x3xf32>
    %100 = vector.extract_strided_slice %96 {offsets = [0, 1], sizes = [16, 1], strides = [1, 1]} : vector<16x3xf32> to vector<16x1xf32>
    %101 = vector.broadcast %100 : vector<16x1xf32> to vector<16x3xf32>
    %102 = arith.mulf %101, %96 : vector<16x3xf32>
    %103 = vector.extract_strided_slice %96 {offsets = [0, 2], sizes = [16, 1], strides = [1, 1]} : vector<16x3xf32> to vector<16x1xf32>
    %104 = vector.broadcast %103 : vector<16x1xf32> to vector<16x3xf32>
    %105 = arith.mulf %104, %96 : vector<16x3xf32>
    %106 = vector.extract_strided_slice %95 {offsets = [0, 0], sizes = [16, 1], strides = [1, 1]} : vector<16x3xf32> to vector<16x1xf32>
    %107 = vector.broadcast %106 : vector<16x1xf32> to vector<16x3xf32>
    %108 = arith.mulf %107, %96 : vector<16x3xf32>
    %109 = vector.extract_strided_slice %95 {offsets = [0, 1], sizes = [16, 1], strides = [1, 1]} : vector<16x3xf32> to vector<16x1xf32>
    %110 = vector.broadcast %109 : vector<16x1xf32> to vector<16x3xf32>
    %111 = arith.mulf %110, %96 : vector<16x3xf32>
    %112 = vector.extract_strided_slice %95 {offsets = [0, 2], sizes = [16, 1], strides = [1, 1]} : vector<16x3xf32> to vector<16x1xf32>
    %113 = vector.broadcast %112 : vector<16x1xf32> to vector<16x3xf32>
    %114 = arith.mulf %113, %96 : vector<16x3xf32>
    %115 = tpu.concatenate %99, %102, %105, %108, %111, %114 in 1 : vector<16x3xf32>, vector<16x3xf32>, vector<16x3xf32>, vector<16x3xf32>, vector<16x3xf32>, vector<16x3xf32> -> vector<16x18xf32>
    %cst_10 = arith.constant dense<0.000000e+00> : vector<16x18xf32>
    %116 = tpu.matmul %9, %115, %cst_10 {dimension_numbers = #tpu.dot_dimension_numbers<[1], [0], [0], [1], [0, 0, 1, 1], [], []>} : vector<16x16xf32>, vector<16x18xf32>, vector<16x18xf32> -> vector<16x18xf32>
    %117 = vector.extract_strided_slice %96 {offsets = [0, 0], sizes = [16, 1], strides = [1, 1]} : vector<16x3xf32> to vector<16x1xf32>
    %118 = vector.extract_strided_slice %116 {offsets = [0, 0], sizes = [16, 3], strides = [1, 1]} : vector<16x18xf32> to vector<16x3xf32>
    %119 = vector.broadcast %117 : vector<16x1xf32> to vector<16x3xf32>
    %120 = arith.mulf %119, %118 : vector<16x3xf32>
    %121 = vector.extract_strided_slice %96 {offsets = [0, 1], sizes = [16, 1], strides = [1, 1]} : vector<16x3xf32> to vector<16x1xf32>
    %122 = vector.extract_strided_slice %116 {offsets = [0, 3], sizes = [16, 3], strides = [1, 1]} : vector<16x18xf32> to vector<16x3xf32>
    %123 = vector.broadcast %121 : vector<16x1xf32> to vector<16x3xf32>
    %124 = arith.mulf %123, %122 : vector<16x3xf32>
    %125 = arith.addf %120, %124 : vector<16x3xf32>
    %126 = vector.extract_strided_slice %96 {offsets = [0, 2], sizes = [16, 1], strides = [1, 1]} : vector<16x3xf32> to vector<16x1xf32>
    %127 = vector.extract_strided_slice %116 {offsets = [0, 6], sizes = [16, 3], strides = [1, 1]} : vector<16x18xf32> to vector<16x3xf32>
    %128 = vector.broadcast %126 : vector<16x1xf32> to vector<16x3xf32>
    %129 = arith.mulf %128, %127 : vector<16x3xf32>
    %130 = arith.addf %125, %129 : vector<16x3xf32>
    %131 = vector.extract_strided_slice %95 {offsets = [0, 0], sizes = [16, 1], strides = [1, 1]} : vector<16x3xf32> to vector<16x1xf32>
    %132 = vector.extract_strided_slice %116 {offsets = [0, 9], sizes = [16, 3], strides = [1, 1]} : vector<16x18xf32> to vector<16x3xf32>
    %133 = vector.broadcast %131 : vector<16x1xf32> to vector<16x3xf32>
    %134 = arith.mulf %133, %132 : vector<16x3xf32>
    %135 = arith.subf %130, %134 : vector<16x3xf32>
    %136 = vector.extract_strided_slice %95 {offsets = [0, 1], sizes = [16, 1], strides = [1, 1]} : vector<16x3xf32> to vector<16x1xf32>
    %137 = vector.extract_strided_slice %116 {offsets = [0, 12], sizes = [16, 3], strides = [1, 1]} : vector<16x18xf32> to vector<16x3xf32>
    %138 = vector.broadcast %136 : vector<16x1xf32> to vector<16x3xf32>
    %139 = arith.mulf %138, %137 : vector<16x3xf32>
    %140 = arith.subf %135, %139 : vector<16x3xf32>
    %141 = vector.extract_strided_slice %95 {offsets = [0, 2], sizes = [16, 1], strides = [1, 1]} : vector<16x3xf32> to vector<16x1xf32>
    %142 = vector.extract_strided_slice %116 {offsets = [0, 15], sizes = [16, 3], strides = [1, 1]} : vector<16x18xf32> to vector<16x3xf32>
    %143 = vector.broadcast %141 : vector<16x1xf32> to vector<16x3xf32>
    %144 = arith.mulf %143, %142 : vector<16x3xf32>
    %145 = arith.subf %140, %144 : vector<16x3xf32>
    %cst_11 = arith.constant -2.000000e+00 : f32
    %146 = vector.broadcast %cst_11 : f32 to vector<16x3xf32>
    %147 = arith.mulf %146, %145 : vector<16x3xf32>
    %148 = vector.extract_strided_slice %7 {offsets = [0, 3], sizes = [16, 3], strides = [1, 1]} : vector<16x6xf32> to vector<16x3xf32>
    %cst_12 = arith.constant 2.500000e-01 : f32
    %149 = vector.broadcast %cst_12 : f32 to vector<16x3xf32>
    %150 = arith.mulf %149, %147 : vector<16x3xf32>
    %151 = arith.addf %92, %150 : vector<16x3xf32>
    %cst_13 = arith.constant 0.707106769 : f32
    %152 = vector.broadcast %cst_13 : f32 to vector<16x1xf32>
    %153 = arith.mulf %152, %5 : vector<16x1xf32>
    %154 = vector.broadcast %153 : vector<16x1xf32> to vector<16x3xf32>
    %155 = arith.mulf %148, %154 : vector<16x3xf32>
    %156 = arith.addf %151, %155 : vector<16x3xf32>
    %157 = tpu.concatenate %4, %156 in 1 : vector<16x3xf32>, vector<16x3xf32> -> vector<16x6xf32>
    %cst_14 = arith.constant dense<0.000000e+00> : vector<16x6xf32>
    %158 = tpu.matmul %10, %157, %cst_14 {dimension_numbers = #tpu.dot_dimension_numbers<[1], [0], [0], [1], [0, 0, 1, 1], [], []>} : vector<16x16xf32>, vector<16x6xf32>, vector<16x6xf32> -> vector<16x6xf32>
    %159 = vector.extract_strided_slice %158 {offsets = [0, 0], sizes = [16, 3], strides = [1, 1]} : vector<16x6xf32> to vector<16x3xf32>
    %160 = vector.extract_strided_slice %158 {offsets = [0, 3], sizes = [16, 3], strides = [1, 1]} : vector<16x6xf32> to vector<16x3xf32>
    %161 = vector.extract_strided_slice %160 {offsets = [0, 0], sizes = [16, 1], strides = [1, 1]} : vector<16x3xf32> to vector<16x1xf32>
    %162 = vector.broadcast %161 : vector<16x1xf32> to vector<16x3xf32>
    %163 = arith.mulf %162, %160 : vector<16x3xf32>
    %164 = vector.extract_strided_slice %160 {offsets = [0, 1], sizes = [16, 1], strides = [1, 1]} : vector<16x3xf32> to vector<16x1xf32>
    %165 = vector.broadcast %164 : vector<16x1xf32> to vector<16x3xf32>
    %166 = arith.mulf %165, %160 : vector<16x3xf32>
    %167 = vector.extract_strided_slice %160 {offsets = [0, 2], sizes = [16, 1], strides = [1, 1]} : vector<16x3xf32> to vector<16x1xf32>
    %168 = vector.broadcast %167 : vector<16x1xf32> to vector<16x3xf32>
    %169 = arith.mulf %168, %160 : vector<16x3xf32>
    %170 = vector.extract_strided_slice %159 {offsets = [0, 0], sizes = [16, 1], strides = [1, 1]} : vector<16x3xf32> to vector<16x1xf32>
    %171 = vector.broadcast %170 : vector<16x1xf32> to vector<16x3xf32>
    %172 = arith.mulf %171, %160 : vector<16x3xf32>
    %173 = vector.extract_strided_slice %159 {offsets = [0, 1], sizes = [16, 1], strides = [1, 1]} : vector<16x3xf32> to vector<16x1xf32>
    %174 = vector.broadcast %173 : vector<16x1xf32> to vector<16x3xf32>
    %175 = arith.mulf %174, %160 : vector<16x3xf32>
    %176 = vector.extract_strided_slice %159 {offsets = [0, 2], sizes = [16, 1], strides = [1, 1]} : vector<16x3xf32> to vector<16x1xf32>
    %177 = vector.broadcast %176 : vector<16x1xf32> to vector<16x3xf32>
    %178 = arith.mulf %177, %160 : vector<16x3xf32>
    %179 = tpu.concatenate %163, %166, %169, %172, %175, %178 in 1 : vector<16x3xf32>, vector<16x3xf32>, vector<16x3xf32>, vector<16x3xf32>, vector<16x3xf32>, vector<16x3xf32> -> vector<16x18xf32>
    %cst_15 = arith.constant dense<0.000000e+00> : vector<16x18xf32>
    %180 = tpu.matmul %9, %179, %cst_15 {dimension_numbers = #tpu.dot_dimension_numbers<[1], [0], [0], [1], [0, 0, 1, 1], [], []>} : vector<16x16xf32>, vector<16x18xf32>, vector<16x18xf32> -> vector<16x18xf32>
    %181 = vector.extract_strided_slice %160 {offsets = [0, 0], sizes = [16, 1], strides = [1, 1]} : vector<16x3xf32> to vector<16x1xf32>
    %182 = vector.extract_strided_slice %180 {offsets = [0, 0], sizes = [16, 3], strides = [1, 1]} : vector<16x18xf32> to vector<16x3xf32>
    %183 = vector.broadcast %181 : vector<16x1xf32> to vector<16x3xf32>
    %184 = arith.mulf %183, %182 : vector<16x3xf32>
    %185 = vector.extract_strided_slice %160 {offsets = [0, 1], sizes = [16, 1], strides = [1, 1]} : vector<16x3xf32> to vector<16x1xf32>
    %186 = vector.extract_strided_slice %180 {offsets = [0, 3], sizes = [16, 3], strides = [1, 1]} : vector<16x18xf32> to vector<16x3xf32>
    %187 = vector.broadcast %185 : vector<16x1xf32> to vector<16x3xf32>
    %188 = arith.mulf %187, %186 : vector<16x3xf32>
    %189 = arith.addf %184, %188 : vector<16x3xf32>
    %190 = vector.extract_strided_slice %160 {offsets = [0, 2], sizes = [16, 1], strides = [1, 1]} : vector<16x3xf32> to vector<16x1xf32>
    %191 = vector.extract_strided_slice %180 {offsets = [0, 6], sizes = [16, 3], strides = [1, 1]} : vector<16x18xf32> to vector<16x3xf32>
    %192 = vector.broadcast %190 : vector<16x1xf32> to vector<16x3xf32>
    %193 = arith.mulf %192, %191 : vector<16x3xf32>
    %194 = arith.addf %189, %193 : vector<16x3xf32>
    %195 = vector.extract_strided_slice %159 {offsets = [0, 0], sizes = [16, 1], strides = [1, 1]} : vector<16x3xf32> to vector<16x1xf32>
    %196 = vector.extract_strided_slice %180 {offsets = [0, 9], sizes = [16, 3], strides = [1, 1]} : vector<16x18xf32> to vector<16x3xf32>
    %197 = vector.broadcast %195 : vector<16x1xf32> to vector<16x3xf32>
    %198 = arith.mulf %197, %196 : vector<16x3xf32>
    %199 = arith.subf %194, %198 : vector<16x3xf32>
    %200 = vector.extract_strided_slice %159 {offsets = [0, 1], sizes = [16, 1], strides = [1, 1]} : vector<16x3xf32> to vector<16x1xf32>
    %201 = vector.extract_strided_slice %180 {offsets = [0, 12], sizes = [16, 3], strides = [1, 1]} : vector<16x18xf32> to vector<16x3xf32>
    %202 = vector.broadcast %200 : vector<16x1xf32> to vector<16x3xf32>
    %203 = arith.mulf %202, %201 : vector<16x3xf32>
    %204 = arith.subf %199, %203 : vector<16x3xf32>
    %205 = vector.extract_strided_slice %159 {offsets = [0, 2], sizes = [16, 1], strides = [1, 1]} : vector<16x3xf32> to vector<16x1xf32>
    %206 = vector.extract_strided_slice %180 {offsets = [0, 15], sizes = [16, 3], strides = [1, 1]} : vector<16x18xf32> to vector<16x3xf32>
    %207 = vector.broadcast %205 : vector<16x1xf32> to vector<16x3xf32>
    %208 = arith.mulf %207, %206 : vector<16x3xf32>
    %209 = arith.subf %204, %208 : vector<16x3xf32>
    %cst_16 = arith.constant -2.000000e+00 : f32
    %210 = vector.broadcast %cst_16 : f32 to vector<16x3xf32>
    %211 = arith.mulf %210, %209 : vector<16x3xf32>
    %212 = vector.broadcast %6 : vector<16x1xf32> to vector<16x3xf32>
    %213 = arith.mulf %211, %212 : vector<16x3xf32>
    %cst_17 = arith.constant dense<0.000000e+00> : vector<16x64xf32>
    %214 = tpu.matmul %3, %11, %cst_17 {dimension_numbers = #tpu.dot_dimension_numbers<[1], [0], [0], [1], [0, 0, 1, 1], [], []>} : vector<16x32xf32>, vector<32x64xf32>, vector<16x64xf32> -> vector<16x64xf32>
    %215 = vector.extract_strided_slice %214 {offsets = [0, 0], sizes = [16, 32], strides = [1, 1]} : vector<16x64xf32> to vector<16x32xf32>
    %216 = vector.extract_strided_slice %214 {offsets = [0, 32], sizes = [16, 32], strides = [1, 1]} : vector<16x64xf32> to vector<16x32xf32>
    %cst_18 = arith.constant 1.000000e+00 : f32
    %217 = vector.broadcast %cst_18 : f32 to vector<16x1xf32>
    %cst_19 = arith.constant dense<0.000000e+00> : vector<16x3xf32>
    %218 = tpu.matmul %10, %4, %cst_19 {dimension_numbers = #tpu.dot_dimension_numbers<[1], [0], [0], [1], [0, 0, 1, 1], [], []>} : vector<16x16xf32>, vector<16x3xf32>, vector<16x3xf32> -> vector<16x3xf32>
    %219 = arith.mulf %218, %218 : vector<16x3xf32>
    %cst_20 = arith.constant dense<0.000000e+00> : vector<16xf32>
    %220 = vector.multi_reduction <add>, %219, %cst_20 [1] : vector<16x3xf32> to vector<16xf32>
    %221 = vector.shape_cast %220 : vector<16xf32> to vector<16x1xf32>
    %cst_21 = arith.constant 0.000000e+00 : f32
    %222 = vector.broadcast %cst_21 : f32 to vector<16x1xf32>
    %223 = arith.subf %222, %221 : vector<16x1xf32>
    %224 = math.exp %223 : vector<16x1xf32>
    %225 = tpu.concatenate %216, %4, %217 in 1 : vector<16x32xf32>, vector<16x3xf32>, vector<16x1xf32> -> vector<16x36xf32>
    %226 = vector.broadcast %224 : vector<16x1xf32> to vector<16x36xf32>
    %227 = arith.mulf %225, %226 : vector<16x36xf32>
    %cst_22 = arith.constant dense<0.000000e+00> : vector<16x36xf32>
    %228 = tpu.matmul %8, %227, %cst_22 {dimension_numbers = #tpu.dot_dimension_numbers<[1], [0], [0], [1], [0, 0, 1, 1], [], []>} : vector<16x16xf32>, vector<16x36xf32>, vector<16x36xf32> -> vector<16x36xf32>
    %229 = vector.extract_strided_slice %228 {offsets = [0, 0], sizes = [16, 32], strides = [1, 1]} : vector<16x36xf32> to vector<16x32xf32>
    %230 = arith.addf %215, %229 : vector<16x32xf32>
    %231 = vector.broadcast %18 : vector<1x32xf32> to vector<16x32xf32>
    %232 = arith.addf %230, %231 : vector<16x32xf32>
    %233 = arith.negf %232 : vector<16x32xf32>
    %234 = math.exp %233 : vector<16x32xf32>
    %cst_23 = arith.constant 1.000000e+00 : f32
    %235 = vector.broadcast %cst_23 : f32 to vector<16x32xf32>
    %236 = arith.addf %235, %234 : vector<16x32xf32>
    %237 = arith.divf %235, %236 : vector<16x32xf32>
    %238 = arith.mulf %232, %237 : vector<16x32xf32>
    %cst_24 = arith.constant dense<0.000000e+00> : vector<16x3xf32>
    %239 = tpu.matmul %10, %156, %cst_24 {dimension_numbers = #tpu.dot_dimension_numbers<[1], [0], [0], [1], [0, 0, 1, 1], [], []>} : vector<16x16xf32>, vector<16x3xf32>, vector<16x3xf32> -> vector<16x3xf32>
    %240 = arith.mulf %239, %239 : vector<16x3xf32>
    %cst_25 = arith.constant dense<0.000000e+00> : vector<16xf32>
    %241 = vector.multi_reduction <add>, %240, %cst_25 [1] : vector<16x3xf32> to vector<16xf32>
    %242 = vector.shape_cast %241 : vector<16xf32> to vector<16x1xf32>
    %cst_26 = arith.constant 0.000000e+00 : f32
    %243 = vector.broadcast %cst_26 : f32 to vector<16x1xf32>
    %244 = arith.subf %243, %242 : vector<16x1xf32>
    %245 = math.exp %244 : vector<16x1xf32>
    %246 = tpu.concatenate %216, %156, %217 in 1 : vector<16x32xf32>, vector<16x3xf32>, vector<16x1xf32> -> vector<16x36xf32>
    %247 = vector.broadcast %245 : vector<16x1xf32> to vector<16x36xf32>
    %248 = arith.mulf %246, %247 : vector<16x36xf32>
    %cst_27 = arith.constant dense<0.000000e+00> : vector<16x36xf32>
    %249 = tpu.matmul %8, %248, %cst_27 {dimension_numbers = #tpu.dot_dimension_numbers<[1], [0], [0], [1], [0, 0, 1, 1], [], []>} : vector<16x16xf32>, vector<16x36xf32>, vector<16x36xf32> -> vector<16x36xf32>
    %250 = vector.extract_strided_slice %249 {offsets = [0, 0], sizes = [16, 32], strides = [1, 1]} : vector<16x36xf32> to vector<16x32xf32>
    %251 = vector.extract_strided_slice %249 {offsets = [0, 32], sizes = [16, 3], strides = [1, 1]} : vector<16x36xf32> to vector<16x3xf32>
    %252 = vector.extract_strided_slice %249 {offsets = [0, 35], sizes = [16, 1], strides = [1, 1]} : vector<16x36xf32> to vector<16x1xf32>
    %253 = arith.addf %215, %250 : vector<16x32xf32>
    %254 = vector.broadcast %18 : vector<1x32xf32> to vector<16x32xf32>
    %255 = arith.addf %253, %254 : vector<16x32xf32>
    %256 = arith.negf %255 : vector<16x32xf32>
    %257 = math.exp %256 : vector<16x32xf32>
    %cst_28 = arith.constant 1.000000e+00 : f32
    %258 = vector.broadcast %cst_28 : f32 to vector<16x32xf32>
    %259 = arith.addf %258, %257 : vector<16x32xf32>
    %260 = arith.divf %258, %259 : vector<16x32xf32>
    %261 = arith.mulf %255, %260 : vector<16x32xf32>
    %262 = vector.broadcast %23 : vector<1x32xf32> to vector<16x32xf32>
    %263 = arith.mulf %261, %262 : vector<16x32xf32>
    %cst_29 = arith.constant dense<0.000000e+00> : vector<16xf32>
    %264 = vector.multi_reduction <add>, %263, %cst_29 [1] : vector<16x32xf32> to vector<16xf32>
    %265 = vector.shape_cast %264 : vector<16xf32> to vector<16x1xf32>
    %266 = math.tanh %265 : vector<16x1xf32>
    %267 = vector.broadcast %252 : vector<16x1xf32> to vector<16x3xf32>
    %268 = arith.mulf %267, %156 : vector<16x3xf32>
    %269 = arith.subf %251, %268 : vector<16x3xf32>
    %270 = vector.broadcast %266 : vector<16x1xf32> to vector<16x3xf32>
    %271 = arith.mulf %270, %269 : vector<16x3xf32>
    %272 = arith.addf %156, %271 : vector<16x3xf32>
    %273 = tpu.concatenate %238, %261 in 0 : vector<16x32xf32>, vector<16x32xf32> -> vector<32x32xf32>
    %cst_30 = arith.constant dense<0.000000e+00> : vector<32x32xf32>
    %274 = tpu.matmul %273, %12, %cst_30 {dimension_numbers = #tpu.dot_dimension_numbers<[1], [0], [0], [1], [0, 0, 1, 1], [], []>} : vector<32x32xf32>, vector<32x32xf32>, vector<32x32xf32> -> vector<32x32xf32>
    %275 = vector.broadcast %19 : vector<1x32xf32> to vector<32x32xf32>
    %276 = arith.addf %274, %275 : vector<32x32xf32>
    %277 = arith.negf %276 : vector<32x32xf32>
    %278 = math.exp %277 : vector<32x32xf32>
    %cst_31 = arith.constant 1.000000e+00 : f32
    %279 = vector.broadcast %cst_31 : f32 to vector<32x32xf32>
    %280 = arith.addf %279, %278 : vector<32x32xf32>
    %281 = arith.divf %279, %280 : vector<32x32xf32>
    %282 = arith.mulf %276, %281 : vector<32x32xf32>
    %cst_32 = arith.constant dense<0.000000e+00> : vector<32x32xf32>
    %283 = tpu.matmul %282, %13, %cst_32 {dimension_numbers = #tpu.dot_dimension_numbers<[1], [0], [0], [1], [0, 0, 1, 1], [], []>} : vector<32x32xf32>, vector<32x32xf32>, vector<32x32xf32> -> vector<32x32xf32>
    %284 = vector.broadcast %20 : vector<1x32xf32> to vector<32x32xf32>
    %285 = arith.addf %283, %284 : vector<32x32xf32>
    %286 = vector.extract_strided_slice %285 {offsets = [0, 0], sizes = [16, 32], strides = [1, 1]} : vector<32x32xf32> to vector<16x32xf32>
    %287 = vector.extract_strided_slice %285 {offsets = [16, 0], sizes = [16, 32], strides = [1, 1]} : vector<32x32xf32> to vector<16x32xf32>
    %288 = tpu.concatenate %286, %287 in 1 : vector<16x32xf32>, vector<16x32xf32> -> vector<16x64xf32>
    %cst_33 = arith.constant dense<0.000000e+00> : vector<2x64xf32>
    %289 = tpu.matmul %27, %288, %cst_33 {dimension_numbers = #tpu.dot_dimension_numbers<[1], [0], [0], [1], [0, 0, 1, 1], [], []>} : vector<2x16xf32>, vector<16x64xf32>, vector<2x64xf32> -> vector<2x64xf32>
    %290 = vector.extract_strided_slice %289 {offsets = [0, 32], sizes = [2, 32], strides = [1, 1]} : vector<2x64xf32> to vector<2x32xf32>
    %cst_34 = arith.constant dense<0.000000e+00> : vector<2x32xf32>
    %291 = tpu.matmul %290, %14, %cst_34 {dimension_numbers = #tpu.dot_dimension_numbers<[1], [0], [0], [1], [0, 0, 1, 1], [], []>} : vector<2x32xf32>, vector<32x32xf32>, vector<2x32xf32> -> vector<2x32xf32>
    %292 = vector.broadcast %21 : vector<1x32xf32> to vector<2x32xf32>
    %293 = arith.addf %291, %292 : vector<2x32xf32>
    %294 = arith.negf %293 : vector<2x32xf32>
    %295 = math.exp %294 : vector<2x32xf32>
    %cst_35 = arith.constant 1.000000e+00 : f32
    %296 = vector.broadcast %cst_35 : f32 to vector<2x32xf32>
    %297 = arith.addf %296, %295 : vector<2x32xf32>
    %298 = arith.divf %296, %297 : vector<2x32xf32>
    %299 = arith.mulf %293, %298 : vector<2x32xf32>
    %300 = vector.broadcast %24 : vector<1x32xf32> to vector<2x32xf32>
    %301 = arith.mulf %299, %300 : vector<2x32xf32>
    %cst_36 = arith.constant dense<0.000000e+00> : vector<2xf32>
    %302 = vector.multi_reduction <add>, %301, %cst_36 [1] : vector<2x32xf32> to vector<2xf32>
    %303 = vector.shape_cast %302 : vector<2xf32> to vector<2x1xf32>
    %304 = vector.broadcast %25 : vector<1x1xf32> to vector<2x1xf32>
    %305 = arith.addf %303, %304 : vector<2x1xf32>
    %306 = arith.subf %272, %156 : vector<16x3xf32>
    %307 = vector.broadcast %6 : vector<16x1xf32> to vector<16x3xf32>
    %308 = arith.mulf %306, %307 : vector<16x3xf32>
    %309 = arith.subf %308, %213 : vector<16x3xf32>
    %310 = arith.mulf %309, %309 : vector<16x3xf32>
    %311 = vector.shape_cast %310 : vector<16x3xf32> to vector<1x16x3xf32>
    %cst_37 = arith.constant dense<0.000000e+00> : vector<1xf32>
    %312 = vector.multi_reduction <add>, %311, %cst_37 [1, 2] : vector<1x16x3xf32> to vector<1xf32>
    %313 = vector.shape_cast %312 : vector<1xf32> to vector<1x1x1xf32>
    %314 = vector.extract %313[0, 0, 0] : f32 from vector<1x1x1xf32>
    %315 = vector.broadcast %314 : f32 to vector<1x1xf32>
    %cst_38 = arith.constant 5.000000e-01 : f32
    %316 = vector.broadcast %cst_38 : f32 to vector<1x1xf32>
    %317 = arith.mulf %315, %316 : vector<1x1xf32>
    %318 = tpu.concatenate %15, %16 in 0 : vector<32x32xf32>, vector<32x32xf32> -> vector<64x32xf32>
    %cst_39 = arith.constant dense<0.000000e+00> : vector<2x32xf32>
    %319 = tpu.matmul %289, %318, %cst_39 {dimension_numbers = #tpu.dot_dimension_numbers<[1], [0], [0], [1], [0, 0, 1, 1], [], []>} : vector<2x64xf32>, vector<64x32xf32>, vector<2x32xf32> -> vector<2x32xf32>
    %320 = vector.broadcast %22 : vector<1x32xf32> to vector<2x32xf32>
    %321 = arith.addf %319, %320 : vector<2x32xf32>
    %322 = arith.negf %321 : vector<2x32xf32>
    %323 = math.exp %322 : vector<2x32xf32>
    %cst_40 = arith.constant 1.000000e+00 : f32
    %324 = vector.broadcast %cst_40 : f32 to vector<2x32xf32>
    %325 = arith.addf %324, %323 : vector<2x32xf32>
    %326 = arith.divf %324, %325 : vector<2x32xf32>
    %327 = arith.mulf %321, %326 : vector<2x32xf32>
    %cst_41 = arith.constant dense<0.000000e+00> : vector<2x32xf32>
    %328 = tpu.matmul %327, %17, %cst_41 {dimension_numbers = #tpu.dot_dimension_numbers<[1], [0], [0], [1], [0, 0, 1, 1], [], []>} : vector<2x32xf32>, vector<32x32xf32>, vector<2x32xf32> -> vector<2x32xf32>
    %329 = vector.extract_strided_slice %328 {offsets = [0, 0], sizes = [2, 10], strides = [1, 1]} : vector<2x32xf32> to vector<2x10xf32>
    %330 = vector.broadcast %26 : vector<1x10xf32> to vector<2x10xf32>
    %331 = arith.addf %329, %330 : vector<2x10xf32>
    %cst_42 = arith.constant dense<0xFF800000> : vector<2xf32>
    %332 = vector.multi_reduction <maximumf>, %331, %cst_42 [1] : vector<2x10xf32> to vector<2xf32>
    %333 = vector.shape_cast %332 : vector<2xf32> to vector<2x1xf32>
    %334 = vector.broadcast %333 : vector<2x1xf32> to vector<2x10xf32>
    %335 = arith.subf %331, %334 : vector<2x10xf32>
    %336 = math.exp %335 : vector<2x10xf32>
    %cst_43 = arith.constant dense<0.000000e+00> : vector<2xf32>
    %337 = vector.multi_reduction <add>, %336, %cst_43 [1] : vector<2x10xf32> to vector<2xf32>
    %338 = vector.shape_cast %337 : vector<2xf32> to vector<2x1xf32>
    %339 = math.log %338 : vector<2x1xf32>
    %340 = arith.addf %333, %339 : vector<2x1xf32>
    %341 = arith.mulf %28, %331 : vector<2x10xf32>
    %cst_44 = arith.constant dense<0.000000e+00> : vector<2xf32>
    %342 = vector.multi_reduction <add>, %341, %cst_44 [1] : vector<2x10xf32> to vector<2xf32>
    %343 = vector.shape_cast %342 : vector<2xf32> to vector<2x1xf32>
    %344 = arith.subf %340, %343 : vector<2x1xf32>
    %345 = vector.shape_cast %344 : vector<2x1xf32> to vector<1x2x1xf32>
    %cst_45 = arith.constant dense<0.000000e+00> : vector<1xf32>
    %346 = vector.multi_reduction <add>, %345, %cst_45 [1, 2] : vector<1x2x1xf32> to vector<1xf32>
    %347 = vector.shape_cast %346 : vector<1xf32> to vector<1x1x1xf32>
    %348 = vector.extract %347[0, 0, 0] : f32 from vector<1x1x1xf32>
    %349 = vector.broadcast %348 : f32 to vector<1x1xf32>
    %cst_46 = arith.constant 5.000000e-01 : f32
    %350 = vector.broadcast %cst_46 : f32 to vector<1x1xf32>
    %351 = arith.mulf %349, %350 : vector<1x1xf32>
    %352 = tpu.iota {dimensions = array<i32: 1>} : vector<8x128xi32>
    %353 = vector.shape_cast %305 : vector<2x1xf32> to vector<1x2x1xf32>
    %cst_47 = arith.constant dense<0.000000e+00> : vector<1xf32>
    %354 = vector.multi_reduction <add>, %353, %cst_47 [1, 2] : vector<1x2x1xf32> to vector<1xf32>
    %355 = vector.shape_cast %354 : vector<1xf32> to vector<1x1x1xf32>
    %356 = vector.extract %355[0, 0, 0] : f32 from vector<1x1x1xf32>
    %357 = vector.broadcast %356 : f32 to vector<1x1xf32>
    %c0_i32 = arith.constant 0 : i32
    %358 = vector.broadcast %c0_i32 : i32 to vector<8x128xi32>
    %359 = arith.cmpi eq, %352, %358 : vector<8x128xi32>
    %c1_i32 = arith.constant 1 : i32
    %360 = vector.broadcast %c1_i32 : i32 to vector<8x128xi32>
    %361 = arith.cmpi eq, %352, %360 : vector<8x128xi32>
    %c2_i32 = arith.constant 2 : i32
    %362 = vector.broadcast %c2_i32 : i32 to vector<8x128xi32>
    %363 = arith.cmpi eq, %352, %362 : vector<8x128xi32>
    %cst_48 = arith.constant 0.000000e+00 : f32
    %364 = vector.shape_cast %357 : vector<1x1xf32> to vector<1x1xf32>
    %365 = vector.broadcast %364 : vector<1x1xf32> to vector<8x128xf32>
    %366 = vector.broadcast %cst_48 : f32 to vector<8x128xf32>
    %367 = arith.select %363, %365, %366 : vector<8x128xi1>, vector<8x128xf32>
    %368 = vector.shape_cast %351 : vector<1x1xf32> to vector<1x1xf32>
    %369 = vector.broadcast %368 : vector<1x1xf32> to vector<8x128xf32>
    %370 = arith.select %361, %369, %367 : vector<8x128xi1>, vector<8x128xf32>
    %371 = vector.shape_cast %317 : vector<1x1xf32> to vector<1x1xf32>
    %372 = vector.broadcast %371 : vector<1x1xf32> to vector<8x128xf32>
    %373 = arith.select %359, %372, %370 : vector<8x128xi1>, vector<8x128xf32>
    %c0_49 = arith.constant 0 : index
    %c0_50 = arith.constant 0 : index
    %374 = vector.load %arg3[%c0_49, %c0_50] : memref<8x128xf32, #tpu.memory_space<vmem>>, vector<8x128xf32>
    tpu.vector_store %arg3[%c0_49, %c0_50], %373 {strides = array<i32>} : memref<8x128xf32, #tpu.memory_space<vmem>>, vector<8x128xf32>,
    return
  }
}

</mosaic_0001>

<llo_original>
// kernel: forward.3
$region0: #{forward.3}
  #allocation0 [shape = 'u32[]', space=smem, size = 0x4, offset = 0x4, fixed_abs, tag = 'smem constant byte address 0x4 - core index']
  #allocation1 [shape = 'u32[144,128]{1,0:T(1,128)}', space=vmem, size = 0x12000, scoped, tag = 'internal scratch']
  %s0 = inlined_call_operand.vmem [shape: f32[16,128], index: 0, kind: input, shape index: {}]
  %s1 = inlined_call_operand.vmem [shape: f32[32,256], index: 1, kind: input, shape index: {}]
  %s2 = inlined_call_operand.vmem [shape: f32[8,128], index: 2, kind: input, shape index: {}]
  %s3 = inlined_call_operand.vmem [shape: f32[8,128], index: 3, kind: output, shape index: {}]
  %s4 = sld [smem:[#allocation0]]
  $region22: #{forward.3} parent=0
    _
  %s6 = ssub.s32 1, %s4
  %s7 = scalar_select 0, %s6, %s4
  // Predicated region
  $region2: #{forward.3} parent=0 // pred_check
    _
  $region3: #{forward.3} parent=0 // pred_check_branch
    %9 = sbr.rel (0) target = $region5
  $region4: #{forward.3} parent=0 // pred_region
    _
  $region5: #{forward.3} parent=0 // pred_fallthru
    _
  // Predicated region
  $region6: #{forward.3} parent=0 // pred_check
    _
  $region7: #{forward.3} parent=0 // pred_check_branch
    %11 = sbr.rel (0) target = $region9
  $region8: #{forward.3} parent=0 // pred_region
    _
  $region9: #{forward.3} parent=0 // pred_fallthru
    _
  // Predicated region
  $region10: #{forward.3} parent=0 // pred_check
    _
  $region11: #{forward.3} parent=0 // pred_check_branch
    %13 = sbr.rel (0) target = $region13
  $region12: #{forward.3} parent=0 // pred_region
    _
  $region13: #{forward.3} parent=0 // pred_fallthru
    _
  %v14 = vld [vmem:[%s0] sm:$0xff]
  %v15 = vld [vmem:[%s0 + $0x8] sm:$0xff]
  %v16 = vld [vmem:[%s1] sm:$0xff]
  %v17 = vld [vmem:[%s1 + $0x8] sm:$0xff]
  %v18 = vld [vmem:[%s1 + $0x10] sm:$0xff]
  %v19 = vld [vmem:[%s1 + $0x18] sm:$0xff]
  %v20 = vld [vmem:[%s1 + $0x20] sm:$0xff]
  %v21 = vld [vmem:[%s1 + $0x28] sm:$0xff]
  %v22 = vld [vmem:[%s1 + $0x30] sm:$0xff]
  %v23 = vld [vmem:[%s1 + $0x38] sm:$0xff]
  %v24 = vld [vmem:[%s2] sm:$0xff]
  %27 = vrot.lane.b32.xlu0 %v14, 96
  %v28 = vpop.permute.xlu0 %27
  %29 = vrot.lane.b32.xlu0 %v15, 96
  %v30 = vpop.permute.xlu0 %29
  %33 = vrot.lane.b32.xlu0 %v14, 99
  %v34 = vpop.permute.xlu0 %33
  %35 = vrot.lane.b32.xlu0 %v15, 99
  %v36 = vpop.permute.xlu0 %35
  %vm39 = vcmask 23552
  %v40 = vsel %vm39, %v28, %v34
  %v41 = vsel %vm39, %v30, %v36
  %42 = vrot.lane.b32.xlu0 %v14, 48
  %v43 = vpop.permute.xlu0 %42
  %44 = vrot.lane.b32.xlu0 %v15, 48
  %v45 = vpop.permute.xlu0 %44
  %vm46 = vcmask 130048
  %v47 = vsel %vm46, %v43, 0
  %v49 = vsel %vm46, %v45, 0
  %51 = vmatprep.subr.mxu0 0.0
  %52 = vmatpush1.msra.mxu0 %v40
  %53 = vmatprep.subr.mxu0 0.0
  %54 = vmatpush1.msra.mxu0 %v41
  %55 = vmatprep.subr.mxu0 0.0
  %56 = vmatpush1.msra.mxu0 0.0
  %57 = vmatprep.subr.mxu0 0.0
  %58 = vmatpush1.msra.mxu0 0.0
  %59 = vmatprep.subr.mxu0 0.0
  %60 = vmatpush1.msra.mxu0 0.0
  %61 = vmatprep.subr.mxu0 0.0
  %62 = vmatpush1.msra.mxu0 0.0
  %63 = vmatprep.subr.mxu0 0.0
  %64 = vmatpush1.msra.mxu0 0.0
  %65 = vmatprep.subr.mxu0 0.0
  %66 = vmatpush1.msra.mxu0 0.0
  %67 = vmatprep.subr.mxu0 0.0
  %68 = vmatpush1.msra.mxu0 0.0
  %69 = vmatprep.subr.mxu0 0.0
  %70 = vmatpush1.msra.mxu0 0.0
  %71 = vmatprep.subr.mxu0 0.0
  %72 = vmatpush1.msra.mxu0 0.0
  %73 = vmatprep.subr.mxu0 0.0
  %74 = vmatpush1.msra.mxu0 0.0
  %75 = vmatprep.subr.mxu0 0.0
  %76 = vmatpush1.msra.mxu0 0.0
  %77 = vmatprep.subr.mxu0 0.0
  %78 = vmatpush1.msra.mxu0 0.0
  %79 = vmatprep.subr.mxu0 0.0
  %80 = vmatpush1.msra.mxu0 0.0
  %81 = vmatprep.subr.mxu0 0.0
  %82 = vmatpush1.msra.mxu0 0.0
  %83 = vmatprep.subr.mxu0 0.0
  %84 = vmatpush1.msra.mxu0 0.0
  %85 = vmatprep.subr.mxu0 0.0
  %86 = vmatpush1.msra.mxu0 0.0
  %87 = vmatprep.subr.mxu0 0.0
  %88 = vmatpush1.msra.mxu0 0.0
  %89 = vmatprep.subr.mxu0 0.0
  %90 = vmatpush1.msra.mxu0 0.0
  %91 = vmatprep.subr.mxu0 0.0
  %92 = vmatpush1.msra.mxu0 0.0
  %93 = vmatprep.subr.mxu0 0.0
  %94 = vmatpush1.msra.mxu0 0.0
  %95 = vmatprep.subr.mxu0 0.0
  %96 = vmatpush1.msra.mxu0 0.0
  %97 = vmatprep.subr.mxu0 0.0
  %98 = vmatpush1.msra.mxu0 0.0
  %99 = vmatprep.subr.mxu0 0.0
  %100 = vmatpush1.msra.mxu0 0.0
  %101 = vmatprep.subr.mxu0 0.0
  %102 = vmatpush1.msra.mxu0 0.0
  %103 = vmatprep.subr.mxu0 0.0
  %104 = vmatpush1.msra.mxu0 0.0
  %105 = vmatprep.subr.mxu0 0.0
  %106 = vmatpush1.msra.mxu0 0.0
  %107 = vmatprep.subr.mxu0 0.0
  %108 = vmatpush1.msra.mxu0 0.0
  %109 = vmatprep.subr.mxu0 0.0
  %110 = vmatpush1.msra.mxu0 0.0
  %111 = vmatprep.subr.mxu0 0.0
  %112 = vmatpush1.msra.mxu0 0.0
  %113 = vmatprep.subr.mxu0 0.0
  %114 = vmatpush1.msra.mxu0 0.0
  %115 = vmatprep.mubr.f32.mxu0 0.0
  %116 = vmatmul.mubr.f32.gmra.mrb[0].mxu0 %v47
  %v117 = vpop.f32.mrb[0].mxu0
  %v118 = vadd.f32 0.0, %v117
  %v119 = vpop.f32.mrb[0].mxu0
  %120 = vmatprep.mubr.f32.mxu0 0.0
  %121 = vmatmul.mubr.f32.gmra.mrb[0].mxu0 %v49
  %v122 = vpop.f32.mrb[0].mxu0
  %v123 = vadd.f32 0.0, %v122
  %v124 = vpop.f32.mrb[0].mxu0
  %125 = vdwg.mxu0
  %127 = vset.pattern.permute.xlu0 3
  %128 = vperm.xlu0 %127, %v118
  %v129 = vpop.permute.xlu0 %128
  %132 = vset.pattern.permute.xlu0 3
  %133 = vperm.xlu0 %132, %v123
  %v134 = vpop.permute.xlu0 %133
  %v136 = vmul.f32 %v129, %v118
  %v137 = vmul.f32 %v134, %v123
  %138 = vset.pattern.permute.xlu0 4
  %139 = vperm.xlu0 %138, %v118
  %v140 = vpop.permute.xlu0 %139
  %142 = vset.pattern.permute.xlu0 4
  %143 = vperm.xlu0 %142, %v123
  %v144 = vpop.permute.xlu0 %143
  %v146 = vmul.f32 %v140, %v118
  %v147 = vmul.f32 %v144, %v123
  %148 = vset.pattern.permute.xlu0 5
  %149 = vperm.xlu0 %148, %v118
  %v150 = vpop.permute.xlu0 %149
  %152 = vset.pattern.permute.xlu0 5
  %153 = vperm.xlu0 %152, %v123
  %v154 = vpop.permute.xlu0 %153
  %v156 = vmul.f32 %v150, %v118
  %v157 = vmul.f32 %v154, %v123
  %158 = vset.pattern.permute.xlu0 0
  %159 = vperm.xlu0 %158, %v118
  %v160 = vpop.permute.xlu0 %159
  %162 = vset.pattern.permute.xlu0 0
  %163 = vperm.xlu0 %162, %v123
  %v164 = vpop.permute.xlu0 %163
  %v166 = vmul.f32 %v160, %v118
  %v167 = vmul.f32 %v164, %v123
  %168 = vset.pattern.permute.xlu0 1
  %169 = vperm.xlu0 %168, %v118
  %v170 = vpop.permute.xlu0 %169
  %172 = vset.pattern.permute.xlu0 1
  %173 = vperm.xlu0 %172, %v123
  %v174 = vpop.permute.xlu0 %173
  %v176 = vmul.f32 %v170, %v118
  %v177 = vmul.f32 %v174, %v123
  %178 = vset.pattern.permute.xlu0 2
  %179 = vperm.xlu0 %178, %v118
  %v180 = vpop.permute.xlu0 %179
  %182 = vset.pattern.permute.xlu0 2
  %183 = vperm.xlu0 %182, %v123
  %v184 = vpop.permute.xlu0 %183
  %v186 = vmul.f32 %v180, %v118
  %v187 = vmul.f32 %v184, %v123
  %190 = vrot.lane.b32.xlu0 %v136, 125
  %v191 = vpop.permute.xlu0 %190
  %192 = vrot.lane.b32.xlu0 %v137, 125
  %v193 = vpop.permute.xlu0 %192
  %198 = vrot.lane.b32.xlu0 %v156, 3
  %v199 = vpop.permute.xlu0 %198
  %200 = vrot.lane.b32.xlu0 %v157, 3
  %v201 = vpop.permute.xlu0 %200
  %206 = vrot.lane.b32.xlu0 %v166, 6
  %v207 = vpop.permute.xlu0 %206
  %208 = vrot.lane.b32.xlu0 %v167, 6
  %v209 = vpop.permute.xlu0 %208
  %214 = vrot.lane.b32.xlu0 %v176, 9
  %v215 = vpop.permute.xlu0 %214
  %216 = vrot.lane.b32.xlu0 %v177, 9
  %v217 = vpop.permute.xlu0 %216
  %222 = vrot.lane.b32.xlu0 %v186, 12
  %v223 = vpop.permute.xlu0 %222
  %224 = vrot.lane.b32.xlu0 %v187, 12
  %v225 = vpop.permute.xlu0 %224
  %v228 = vsel %vm39, %v191, %v146
  %v229 = vsel %vm39, %v193, %v147
  %vm230 = vcmask 48128
  %v231 = vsel %vm230, %v228, %v199
  %v232 = vsel %vm230, %v229, %v201
  %vm233 = vcmask 72704
  %v234 = vsel %vm233, %v231, %v207
  %v235 = vsel %vm233, %v232, %v209
  %vm236 = vcmask 97280
  %v237 = vsel %vm236, %v234, %v215
  %v238 = vsel %vm236, %v235, %v217
  %vm239 = vcmask 121856
  %v240 = vsel %vm239, %v237, %v223
  %v241 = vsel %vm239, %v238, %v225
  %242 = vrot.lane.b32.xlu0 %v14, 64
  %v243 = vpop.permute.xlu0 %242
  %244 = vrot.lane.b32.xlu0 %v15, 64
  %v245 = vpop.permute.xlu0 %244
  %v246 = vsel %vm46, %v243, 0
  %v248 = vsel %vm46, %v245, 0
  %250 = vmatprep.subr.mxu0 0.0
  %251 = vmatpush1.msra.mxu0 %v240
  %252 = vmatprep.subr.mxu0 0.0
  %253 = vmatpush1.msra.mxu0 %v241
  %254 = vmatprep.subr.mxu0 0.0
  %255 = vmatpush1.msra.mxu0 0.0
  %256 = vmatprep.subr.mxu0 0.0
  %257 = vmatpush1.msra.mxu0 0.0
  %258 = vmatprep.subr.mxu0 0.0
  %259 = vmatpush1.msra.mxu0 0.0
  %260 = vmatprep.subr.mxu0 0.0
  %261 = vmatpush1.msra.mxu0 0.0
  %262 = vmatprep.subr.mxu0 0.0
  %263 = vmatpush1.msra.mxu0 0.0
  %264 = vmatprep.subr.mxu0 0.0
  %265 = vmatpush1.msra.mxu0 0.0
  %266 = vmatprep.subr.mxu0 0.0
  %267 = vmatpush1.msra.mxu0 0.0
  %268 = vmatprep.subr.mxu0 0.0
  %269 = vmatpush1.msra.mxu0 0.0
  %270 = vmatprep.subr.mxu0 0.0
  %271 = vmatpush1.msra.mxu0 0.0
  %272 = vmatprep.subr.mxu0 0.0
  %273 = vmatpush1.msra.mxu0 0.0
  %274 = vmatprep.subr.mxu0 0.0
  %275 = vmatpush1.msra.mxu0 0.0
  %276 = vmatprep.subr.mxu0 0.0
  %277 = vmatpush1.msra.mxu0 0.0
  %278 = vmatprep.subr.mxu0 0.0
  %279 = vmatpush1.msra.mxu0 0.0
  %280 = vmatprep.subr.mxu0 0.0
  %281 = vmatpush1.msra.mxu0 0.0
  %282 = vmatprep.subr.mxu0 0.0
  %283 = vmatpush1.msra.mxu0 0.0
  %284 = vmatprep.subr.mxu0 0.0
  %285 = vmatpush1.msra.mxu0 0.0
  %286 = vmatprep.subr.mxu0 0.0
  %287 = vmatpush1.msra.mxu0 0.0
  %288 = vmatprep.subr.mxu0 0.0
  %289 = vmatpush1.msra.mxu0 0.0
  %290 = vmatprep.subr.mxu0 0.0
  %291 = vmatpush1.msra.mxu0 0.0
  %292 = vmatprep.subr.mxu0 0.0
  %293 = vmatpush1.msra.mxu0 0.0
  %294 = vmatprep.subr.mxu0 0.0
  %295 = vmatpush1.msra.mxu0 0.0
  %296 = vmatprep.subr.mxu0 0.0
  %297 = vmatpush1.msra.mxu0 0.0
  %298 = vmatprep.subr.mxu0 0.0
  %299 = vmatpush1.msra.mxu0 0.0
  %300 = vmatprep.subr.mxu0 0.0
  %301 = vmatpush1.msra.mxu0 0.0
  %302 = vmatprep.subr.mxu0 0.0
  %303 = vmatpush1.msra.mxu0 0.0
  %304 = vmatprep.subr.mxu0 0.0
  %305 = vmatpush1.msra.mxu0 0.0
  %306 = vmatprep.subr.mxu0 0.0
  %307 = vmatpush1.msra.mxu0 0.0
  %308 = vmatprep.subr.mxu0 0.0
  %309 = vmatpush1.msra.mxu0 0.0
  %310 = vmatprep.subr.mxu0 0.0
  %311 = vmatpush1.msra.mxu0 0.0
  %312 = vmatprep.subr.mxu0 0.0
  %313 = vmatpush1.msra.mxu0 0.0
  %314 = vmatprep.mubr.f32.mxu0 0.0
  %315 = vmatmul.mubr.f32.gmra.mrb[0].mxu0 %v246
  %v316 = vpop.f32.mrb[0].mxu0
  %v317 = vadd.f32 0.0, %v316
  %v318 = vpop.f32.mrb[0].mxu0
  %319 = vmatprep.mubr.f32.mxu0 0.0
  %320 = vmatmul.mubr.f32.gmra.mrb[0].mxu0 %v248
  %v321 = vpop.f32.mrb[0].mxu0
  %v322 = vadd.f32 0.0, %v321
  %v323 = vpop.f32.mrb[0].mxu0
  %324 = vdwg.mxu0
  %v325 = vmul.f32 %v129, %v317
  %v326 = vmul.f32 %v134, %v322
  %v327 = vmul.f32 %v140, %v317
  %v328 = vmul.f32 %v144, %v322
  %331 = vrot.lane.b32.xlu0 %v327, 125
  %v332 = vpop.permute.xlu0 %331
  %333 = vrot.lane.b32.xlu0 %v328, 125
  %v334 = vpop.permute.xlu0 %333
  %v337 = vadd.f32 %v325, %v332
  %v338 = vadd.f32 %v326, %v334
  %v339 = vmul.f32 %v150, %v317
  %v340 = vmul.f32 %v154, %v322
  %343 = vrot.lane.b32.xlu0 %v339, 122
  %v344 = vpop.permute.xlu0 %343
  %345 = vrot.lane.b32.xlu0 %v340, 122
  %v346 = vpop.permute.xlu0 %345
  %v349 = vadd.f32 %v337, %v344
  %v350 = vadd.f32 %v338, %v346
  %v351 = vmul.f32 %v160, %v317
  %v352 = vmul.f32 %v164, %v322
  %355 = vrot.lane.b32.xlu0 %v351, 119
  %v356 = vpop.permute.xlu0 %355
  %357 = vrot.lane.b32.xlu0 %v352, 119
  %v358 = vpop.permute.xlu0 %357
  %v361 = vsub.f32 %v349, %v356
  %v362 = vsub.f32 %v350, %v358
  %v363 = vmul.f32 %v170, %v317
  %v364 = vmul.f32 %v174, %v322
  %367 = vrot.lane.b32.xlu0 %v363, 116
  %v368 = vpop.permute.xlu0 %367
  %369 = vrot.lane.b32.xlu0 %v364, 116
  %v370 = vpop.permute.xlu0 %369
  %v373 = vsub.f32 %v361, %v368
  %v374 = vsub.f32 %v362, %v370
  %v375 = vmul.f32 %v180, %v317
  %v376 = vmul.f32 %v184, %v322
  %379 = vrot.lane.b32.xlu0 %v375, 113
  %v380 = vpop.permute.xlu0 %379
  %381 = vrot.lane.b32.xlu0 %v376, 113
  %v382 = vpop.permute.xlu0 %381
  %v385 = vsub.f32 %v373, %v380
  %v386 = vsub.f32 %v374, %v382
  %v387 = vmul.f32 %v385, -2.0
  %v388 = vmul.f32 %v386, -2.0
  %v389 = vmul.f32 %v387, 0.5
  %v390 = vmul.f32 %v388, 0.5
  %393 = vrot.lane.b32.xlu0 %v389, 32
  %v394 = vpop.permute.xlu0 %393
  %395 = vrot.lane.b32.xlu0 %v390, 32
  %v396 = vpop.permute.xlu0 %395
  %v399 = vadd.f32 %v14, %v394
  %v400 = vadd.f32 %v15, %v396
  %401 = vset.pattern.permute.xlu0 35
  %402 = vperm.xlu0 %401, %v14
  %v403 = vpop.permute.xlu0 %402
  %405 = vset.pattern.permute.xlu0 35
  %406 = vperm.xlu0 %405, %v15
  %v407 = vpop.permute.xlu0 %406
  %v409 = vmul.f32 %v14, %v403
  %v410 = vmul.f32 %v15, %v407
  %413 = vrot.lane.b32.xlu0 %v409, 123
  %v414 = vpop.permute.xlu0 %413
  %415 = vrot.lane.b32.xlu0 %v410, 123
  %v416 = vpop.permute.xlu0 %415
  %v419 = vadd.f32 %v399, %v414
  %v420 = vadd.f32 %v400, %v416
  %423 = vrot.lane.b32.xlu0 %v419, 99
  %v424 = vpop.permute.xlu0 %423
  %425 = vrot.lane.b32.xlu0 %v420, 99
  %v426 = vpop.permute.xlu0 %425
  %v429 = vsel %vm39, %v28, %v424
  %v430 = vsel %vm39, %v30, %v426
  %431 = vmatprep.subr.mxu0 0.0
  %432 = vmatpush1.msra.mxu0 %v429
  %433 = vmatprep.subr.mxu0 0.0
  %434 = vmatpush1.msra.mxu0 %v430
  %435 = vmatprep.subr.mxu0 0.0
  %436 = vmatpush1.msra.mxu0 0.0
  %437 = vmatprep.subr.mxu0 0.0
  %438 = vmatpush1.msra.mxu0 0.0
  %439 = vmatprep.subr.mxu0 0.0
  %440 = vmatpush1.msra.mxu0 0.0
  %441 = vmatprep.subr.mxu0 0.0
  %442 = vmatpush1.msra.mxu0 0.0
  %443 = vmatprep.subr.mxu0 0.0
  %444 = vmatpush1.msra.mxu0 0.0
  %445 = vmatprep.subr.mxu0 0.0
  %446 = vmatpush1.msra.mxu0 0.0
  %447 = vmatprep.subr.mxu0 0.0
  %448 = vmatpush1.msra.mxu0 0.0
  %449 = vmatprep.subr.mxu0 0.0
  %450 = vmatpush1.msra.mxu0 0.0
  %451 = vmatprep.subr.mxu0 0.0
  %452 = vmatpush1.msra.mxu0 0.0
  %453 = vmatprep.subr.mxu0 0.0
  %454 = vmatpush1.msra.mxu0 0.0
  %455 = vmatprep.subr.mxu0 0.0
  %456 = vmatpush1.msra.mxu0 0.0
  %457 = vmatprep.subr.mxu0 0.0
  %458 = vmatpush1.msra.mxu0 0.0
  %459 = vmatprep.subr.mxu0 0.0
  %460 = vmatpush1.msra.mxu0 0.0
  %461 = vmatprep.subr.mxu0 0.0
  %462 = vmatpush1.msra.mxu0 0.0
  %463 = vmatprep.subr.mxu0 0.0
  %464 = vmatpush1.msra.mxu0 0.0
  %465 = vmatprep.subr.mxu0 0.0
  %466 = vmatpush1.msra.mxu0 0.0
  %467 = vmatprep.subr.mxu0 0.0
  %468 = vmatpush1.msra.mxu0 0.0
  %469 = vmatprep.subr.mxu0 0.0
  %470 = vmatpush1.msra.mxu0 0.0
  %471 = vmatprep.subr.mxu0 0.0
  %472 = vmatpush1.msra.mxu0 0.0
  %473 = vmatprep.subr.mxu0 0.0
  %474 = vmatpush1.msra.mxu0 0.0
  %475 = vmatprep.subr.mxu0 0.0
  %476 = vmatpush1.msra.mxu0 0.0
  %477 = vmatprep.subr.mxu0 0.0
  %478 = vmatpush1.msra.mxu0 0.0
  %479 = vmatprep.subr.mxu0 0.0
  %480 = vmatpush1.msra.mxu0 0.0
  %481 = vmatprep.subr.mxu0 0.0
  %482 = vmatpush1.msra.mxu0 0.0
  %483 = vmatprep.subr.mxu0 0.0
  %484 = vmatpush1.msra.mxu0 0.0
  %485 = vmatprep.subr.mxu0 0.0
  %486 = vmatpush1.msra.mxu0 0.0
  %487 = vmatprep.subr.mxu0 0.0
  %488 = vmatpush1.msra.mxu0 0.0
  %489 = vmatprep.subr.mxu0 0.0
  %490 = vmatpush1.msra.mxu0 0.0
  %491 = vmatprep.subr.mxu0 0.0
  %492 = vmatpush1.msra.mxu0 0.0
  %493 = vmatprep.subr.mxu0 0.0
  %494 = vmatpush1.msra.mxu0 0.0
  %495 = vmatprep.mubr.f32.mxu0 0.0
  %496 = vmatmul.mubr.f32.gmra.mrb[0].mxu0 %v47
  %v497 = vpop.f32.mrb[0].mxu0
  %v498 = vadd.f32 0.0, %v497
  %v499 = vpop.f32.mrb[0].mxu0
  %500 = vmatprep.mubr.f32.mxu0 0.0
  %501 = vmatmul.mubr.f32.gmra.mrb[0].mxu0 %v49
  %v502 = vpop.f32.mrb[0].mxu0
  %v503 = vadd.f32 0.0, %v502
  %v504 = vpop.f32.mrb[0].mxu0
  %505 = vdwg.mxu0
  %507 = vset.pattern.permute.xlu0 3
  %508 = vperm.xlu0 %507, %v498
  %v509 = vpop.permute.xlu0 %508
  %512 = vset.pattern.permute.xlu0 3
  %513 = vperm.xlu0 %512, %v503
  %v514 = vpop.permute.xlu0 %513
  %v516 = vmul.f32 %v509, %v498
  %v517 = vmul.f32 %v514, %v503
  %518 = vset.pattern.permute.xlu0 4
  %519 = vperm.xlu0 %518, %v498
  %v520 = vpop.permute.xlu0 %519
  %522 = vset.pattern.permute.xlu0 4
  %523 = vperm.xlu0 %522, %v503
  %v524 = vpop.permute.xlu0 %523
  %v526 = vmul.f32 %v520, %v498
  %v527 = vmul.f32 %v524, %v503
  %528 = vset.pattern.permute.xlu0 5
  %529 = vperm.xlu0 %528, %v498
  %v530 = vpop.permute.xlu0 %529
  %532 = vset.pattern.permute.xlu0 5
  %533 = vperm.xlu0 %532, %v503
  %v534 = vpop.permute.xlu0 %533
  %v536 = vmul.f32 %v530, %v498
  %v537 = vmul.f32 %v534, %v503
  %538 = vset.pattern.permute.xlu0 0
  %539 = vperm.xlu0 %538, %v498
  %v540 = vpop.permute.xlu0 %539
  %542 = vset.pattern.permute.xlu0 0
  %543 = vperm.xlu0 %542, %v503
  %v544 = vpop.permute.xlu0 %543
  %v546 = vmul.f32 %v540, %v498
  %v547 = vmul.f32 %v544, %v503
  %548 = vset.pattern.permute.xlu0 1
  %549 = vperm.xlu0 %548, %v498
  %v550 = vpop.permute.xlu0 %549
  %552 = vset.pattern.permute.xlu0 1
  %553 = vperm.xlu0 %552, %v503
  %v554 = vpop.permute.xlu0 %553
  %v556 = vmul.f32 %v550, %v498
  %v557 = vmul.f32 %v554, %v503
  %558 = vset.pattern.permute.xlu0 2
  %559 = vperm.xlu0 %558, %v498
  %v560 = vpop.permute.xlu0 %559
  %562 = vset.pattern.permute.xlu0 2
  %563 = vperm.xlu0 %562, %v503
  %v564 = vpop.permute.xlu0 %563
  %v566 = vmul.f32 %v560, %v498
  %v567 = vmul.f32 %v564, %v503
  %570 = vrot.lane.b32.xlu0 %v516, 125
  %v571 = vpop.permute.xlu0 %570
  %572 = vrot.lane.b32.xlu0 %v517, 125
  %v573 = vpop.permute.xlu0 %572
  %578 = vrot.lane.b32.xlu0 %v536, 3
  %v579 = vpop.permute.xlu0 %578
  %580 = vrot.lane.b32.xlu0 %v537, 3
  %v581 = vpop.permute.xlu0 %580
  %586 = vrot.lane.b32.xlu0 %v546, 6
  %v587 = vpop.permute.xlu0 %586
  %588 = vrot.lane.b32.xlu0 %v547, 6
  %v589 = vpop.permute.xlu0 %588
  %594 = vrot.lane.b32.xlu0 %v556, 9
  %v595 = vpop.permute.xlu0 %594
  %596 = vrot.lane.b32.xlu0 %v557, 9
  %v597 = vpop.permute.xlu0 %596
  %602 = vrot.lane.b32.xlu0 %v566, 12
  %v603 = vpop.permute.xlu0 %602
  %604 = vrot.lane.b32.xlu0 %v567, 12
  %v605 = vpop.permute.xlu0 %604
  %v608 = vsel %vm39, %v571, %v526
  %v609 = vsel %vm39, %v573, %v527
  %v610 = vsel %vm230, %v608, %v579
  %v611 = vsel %vm230, %v609, %v581
  %v612 = vsel %vm233, %v610, %v587
  %v613 = vsel %vm233, %v611, %v589
  %v614 = vsel %vm236, %v612, %v595
  %v615 = vsel %vm236, %v613, %v597
  %v616 = vsel %vm239, %v614, %v603
  %v617 = vsel %vm239, %v615, %v605
  %618 = vmatprep.subr.mxu0 0.0
  %619 = vmatpush1.msra.mxu0 %v616
  %620 = vmatprep.subr.mxu0 0.0
  %621 = vmatpush1.msra.mxu0 %v617
  %622 = vmatprep.subr.mxu0 0.0
  %623 = vmatpush1.msra.mxu0 0.0
  %624 = vmatprep.subr.mxu0 0.0
  %625 = vmatpush1.msra.mxu0 0.0
  %626 = vmatprep.subr.mxu0 0.0
  %627 = vmatpush1.msra.mxu0 0.0
  %628 = vmatprep.subr.mxu0 0.0
  %629 = vmatpush1.msra.mxu0 0.0
  %630 = vmatprep.subr.mxu0 0.0
  %631 = vmatpush1.msra.mxu0 0.0
  %632 = vmatprep.subr.mxu0 0.0
  %633 = vmatpush1.msra.mxu0 0.0
  %634 = vmatprep.subr.mxu0 0.0
  %635 = vmatpush1.msra.mxu0 0.0
  %636 = vmatprep.subr.mxu0 0.0
  %637 = vmatpush1.msra.mxu0 0.0
  %638 = vmatprep.subr.mxu0 0.0
  %639 = vmatpush1.msra.mxu0 0.0
  %640 = vmatprep.subr.mxu0 0.0
  %641 = vmatpush1.msra.mxu0 0.0
  %642 = vmatprep.subr.mxu0 0.0
  %643 = vmatpush1.msra.mxu0 0.0
  %644 = vmatprep.subr.mxu0 0.0
  %645 = vmatpush1.msra.mxu0 0.0
  %646 = vmatprep.subr.mxu0 0.0
  %647 = vmatpush1.msra.mxu0 0.0
  %648 = vmatprep.subr.mxu0 0.0
  %649 = vmatpush1.msra.mxu0 0.0
  %650 = vmatprep.subr.mxu0 0.0
  %651 = vmatpush1.msra.mxu0 0.0
  %652 = vmatprep.subr.mxu0 0.0
  %653 = vmatpush1.msra.mxu0 0.0
  %654 = vmatprep.subr.mxu0 0.0
  %655 = vmatpush1.msra.mxu0 0.0
  %656 = vmatprep.subr.mxu0 0.0
  %657 = vmatpush1.msra.mxu0 0.0
  %658 = vmatprep.subr.mxu0 0.0
  %659 = vmatpush1.msra.mxu0 0.0
  %660 = vmatprep.subr.mxu0 0.0
  %661 = vmatpush1.msra.mxu0 0.0
  %662 = vmatprep.subr.mxu0 0.0
  %663 = vmatpush1.msra.mxu0 0.0
  %664 = vmatprep.subr.mxu0 0.0
  %665 = vmatpush1.msra.mxu0 0.0
  %666 = vmatprep.subr.mxu0 0.0
  %667 = vmatpush1.msra.mxu0 0.0
  %668 = vmatprep.subr.mxu0 0.0
  %669 = vmatpush1.msra.mxu0 0.0
  %670 = vmatprep.subr.mxu0 0.0
  %671 = vmatpush1.msra.mxu0 0.0
  %672 = vmatprep.subr.mxu0 0.0
  %673 = vmatpush1.msra.mxu0 0.0
  %674 = vmatprep.subr.mxu0 0.0
  %675 = vmatpush1.msra.mxu0 0.0
  %676 = vmatprep.subr.mxu0 0.0
  %677 = vmatpush1.msra.mxu0 0.0
  %678 = vmatprep.subr.mxu0 0.0
  %679 = vmatpush1.msra.mxu0 0.0
  %680 = vmatprep.subr.mxu0 0.0
  %681 = vmatpush1.msra.mxu0 0.0
  %682 = vmatprep.mubr.f32.mxu0 0.0
  %683 = vmatmul.mubr.f32.gmra.mrb[0].mxu0 %v246
  %v684 = vpop.f32.mrb[0].mxu0
  %v685 = vadd.f32 0.0, %v684
  %v686 = vpop.f32.mrb[0].mxu0
  %687 = vmatprep.mubr.f32.mxu0 0.0
  %688 = vmatmul.mubr.f32.gmra.mrb[0].mxu0 %v248
  %v689 = vpop.f32.mrb[0].mxu0
  %v690 = vadd.f32 0.0, %v689
  %v691 = vpop.f32.mrb[0].mxu0
  %692 = vdwg.mxu0
  %v693 = vmul.f32 %v509, %v685
  %v694 = vmul.f32 %v514, %v690
  %v695 = vmul.f32 %v520, %v685
  %v696 = vmul.f32 %v524, %v690
  %699 = vrot.lane.b32.xlu0 %v695, 125
  %v700 = vpop.permute.xlu0 %699
  %701 = vrot.lane.b32.xlu0 %v696, 125
  %v702 = vpop.permute.xlu0 %701
  %v705 = vadd.f32 %v693, %v700
  %v706 = vadd.f32 %v694, %v702
  %v707 = vmul.f32 %v530, %v685
  %v708 = vmul.f32 %v534, %v690
  %711 = vrot.lane.b32.xlu0 %v707, 122
  %v712 = vpop.permute.xlu0 %711
  %713 = vrot.lane.b32.xlu0 %v708, 122
  %v714 = vpop.permute.xlu0 %713
  %v717 = vadd.f32 %v705, %v712
  %v718 = vadd.f32 %v706, %v714
  %v719 = vmul.f32 %v540, %v685
  %v720 = vmul.f32 %v544, %v690
  %723 = vrot.lane.b32.xlu0 %v719, 119
  %v724 = vpop.permute.xlu0 %723
  %725 = vrot.lane.b32.xlu0 %v720, 119
  %v726 = vpop.permute.xlu0 %725
  %v729 = vsub.f32 %v717, %v724
  %v730 = vsub.f32 %v718, %v726
  %v731 = vmul.f32 %v550, %v685
  %v732 = vmul.f32 %v554, %v690
  %735 = vrot.lane.b32.xlu0 %v731, 116
  %v736 = vpop.permute.xlu0 %735
  %737 = vrot.lane.b32.xlu0 %v732, 116
  %v738 = vpop.permute.xlu0 %737
  %v741 = vsub.f32 %v729, %v736
  %v742 = vsub.f32 %v730, %v738
  %v743 = vmul.f32 %v560, %v685
  %v744 = vmul.f32 %v564, %v690
  %747 = vrot.lane.b32.xlu0 %v743, 113
  %v748 = vpop.permute.xlu0 %747
  %749 = vrot.lane.b32.xlu0 %v744, 113
  %v750 = vpop.permute.xlu0 %749
  %v753 = vsub.f32 %v741, %v748
  %v754 = vsub.f32 %v742, %v750
  %v755 = vmul.f32 %v753, -2.0
  %v756 = vmul.f32 %v754, -2.0
  %v757 = vmul.f32 %v755, 0.25
  %v758 = vmul.f32 %v756, 0.25
  %761 = vrot.lane.b32.xlu0 %v757, 32
  %v762 = vpop.permute.xlu0 %761
  %763 = vrot.lane.b32.xlu0 %v758, 32
  %v764 = vpop.permute.xlu0 %763
  %v767 = vadd.f32 %v419, %v762
  %v768 = vadd.f32 %v420, %v764
  %v769 = vmul.f32 %v14, 0.70710677
  %v770 = vmul.f32 %v15, 0.70710677
  %772 = vset.pattern.permute.xlu0 35
  %773 = vperm.xlu0 %772, %v769
  %v774 = vpop.permute.xlu0 %773
  %777 = vset.pattern.permute.xlu0 35
  %778 = vperm.xlu0 %777, %v770
  %v779 = vpop.permute.xlu0 %778
  %v781 = vmul.f32 %v14, %v774
  %v782 = vmul.f32 %v15, %v779
  %785 = vrot.lane.b32.xlu0 %v781, 120
  %v786 = vpop.permute.xlu0 %785
  %787 = vrot.lane.b32.xlu0 %v782, 120
  %v788 = vpop.permute.xlu0 %787
  %v791 = vadd.f32 %v767, %v786
  %v792 = vadd.f32 %v768, %v788
  %795 = vrot.lane.b32.xlu0 %v791, 99
  %v796 = vpop.permute.xlu0 %795
  %797 = vrot.lane.b32.xlu0 %v792, 99
  %v798 = vpop.permute.xlu0 %797
  %v801 = vsel %vm39, %v28, %v796
  %v802 = vsel %vm39, %v30, %v798
  %803 = vmatprep.subr.mxu0 0.0
  %804 = vmatpush1.msra.mxu0 %v801
  %805 = vmatprep.subr.mxu0 0.0
  %806 = vmatpush1.msra.mxu0 %v802
  %807 = vmatprep.subr.mxu0 0.0
  %808 = vmatpush1.msra.mxu0 0.0
  %809 = vmatprep.subr.mxu0 0.0
  %810 = vmatpush1.msra.mxu0 0.0
  %811 = vmatprep.subr.mxu0 0.0
  %812 = vmatpush1.msra.mxu0 0.0
  %813 = vmatprep.subr.mxu0 0.0
  %814 = vmatpush1.msra.mxu0 0.0
  %815 = vmatprep.subr.mxu0 0.0
  %816 = vmatpush1.msra.mxu0 0.0
  %817 = vmatprep.subr.mxu0 0.0
  %818 = vmatpush1.msra.mxu0 0.0
  %819 = vmatprep.subr.mxu0 0.0
  %820 = vmatpush1.msra.mxu0 0.0
  %821 = vmatprep.subr.mxu0 0.0
  %822 = vmatpush1.msra.mxu0 0.0
  %823 = vmatprep.subr.mxu0 0.0
  %824 = vmatpush1.msra.mxu0 0.0
  %825 = vmatprep.subr.mxu0 0.0
  %826 = vmatpush1.msra.mxu0 0.0
  %827 = vmatprep.subr.mxu0 0.0
  %828 = vmatpush1.msra.mxu0 0.0
  %829 = vmatprep.subr.mxu0 0.0
  %830 = vmatpush1.msra.mxu0 0.0
  %831 = vmatprep.subr.mxu0 0.0
  %832 = vmatpush1.msra.mxu0 0.0
  %833 = vmatprep.subr.mxu0 0.0
  %834 = vmatpush1.msra.mxu0 0.0
  %835 = vmatprep.subr.mxu0 0.0
  %836 = vmatpush1.msra.mxu0 0.0
  %837 = vmatprep.subr.mxu0 0.0
  %838 = vmatpush1.msra.mxu0 0.0
  %839 = vmatprep.subr.mxu0 0.0
  %840 = vmatpush1.msra.mxu0 0.0
  %841 = vmatprep.subr.mxu0 0.0
  %842 = vmatpush1.msra.mxu0 0.0
  %843 = vmatprep.subr.mxu0 0.0
  %844 = vmatpush1.msra.mxu0 0.0
  %845 = vmatprep.subr.mxu0 0.0
  %846 = vmatpush1.msra.mxu0 0.0
  %847 = vmatprep.subr.mxu0 0.0
  %848 = vmatpush1.msra.mxu0 0.0
  %849 = vmatprep.subr.mxu0 0.0
  %850 = vmatpush1.msra.mxu0 0.0
  %851 = vmatprep.subr.mxu0 0.0
  %852 = vmatpush1.msra.mxu0 0.0
  %853 = vmatprep.subr.mxu0 0.0
  %854 = vmatpush1.msra.mxu0 0.0
  %855 = vmatprep.subr.mxu0 0.0
  %856 = vmatpush1.msra.mxu0 0.0
  %857 = vmatprep.subr.mxu0 0.0
  %858 = vmatpush1.msra.mxu0 0.0
  %859 = vmatprep.subr.mxu0 0.0
  %860 = vmatpush1.msra.mxu0 0.0
  %861 = vmatprep.subr.mxu0 0.0
  %862 = vmatpush1.msra.mxu0 0.0
  %863 = vmatprep.subr.mxu0 0.0
  %864 = vmatpush1.msra.mxu0 0.0
  %865 = vmatprep.subr.mxu0 0.0
  %866 = vmatpush1.msra.mxu0 0.0
  %867 = vmatprep.mubr.f32.mxu0 0.0
  %868 = vmatmul.mubr.f32.gmra.mrb[0].mxu0 %v47
  %v869 = vpop.f32.mrb[0].mxu0
  %v870 = vadd.f32 0.0, %v869
  %v871 = vpop.f32.mrb[0].mxu0
  %872 = vmatprep.mubr.f32.mxu0 0.0
  %873 = vmatmul.mubr.f32.gmra.mrb[0].mxu0 %v49
  %v874 = vpop.f32.mrb[0].mxu0
  %v875 = vadd.f32 0.0, %v874
  %v876 = vpop.f32.mrb[0].mxu0
  %877 = vdwg.mxu0
  %879 = vset.pattern.permute.xlu0 3
  %880 = vperm.xlu0 %879, %v870
  %v881 = vpop.permute.xlu0 %880
  %884 = vset.pattern.permute.xlu0 3
  %885 = vperm.xlu0 %884, %v875
  %v886 = vpop.permute.xlu0 %885
  %v888 = vmul.f32 %v881, %v870
  %v889 = vmul.f32 %v886, %v875
  %890 = vset.pattern.permute.xlu0 4
  %891 = vperm.xlu0 %890, %v870
  %v892 = vpop.permute.xlu0 %891
  %894 = vset.pattern.permute.xlu0 4
  %895 = vperm.xlu0 %894, %v875
  %v896 = vpop.permute.xlu0 %895
  %v898 = vmul.f32 %v892, %v870
  %v899 = vmul.f32 %v896, %v875
  %900 = vset.pattern.permute.xlu0 5
  %901 = vperm.xlu0 %900, %v870
  %v902 = vpop.permute.xlu0 %901
  %904 = vset.pattern.permute.xlu0 5
  %905 = vperm.xlu0 %904, %v875
  %v906 = vpop.permute.xlu0 %905
  %v908 = vmul.f32 %v902, %v870
  %v909 = vmul.f32 %v906, %v875
  %910 = vset.pattern.permute.xlu0 0
  %911 = vperm.xlu0 %910, %v870
  %v912 = vpop.permute.xlu0 %911
  %914 = vset.pattern.permute.xlu0 0
  %915 = vperm.xlu0 %914, %v875
  %v916 = vpop.permute.xlu0 %915
  %v918 = vmul.f32 %v912, %v870
  %v919 = vmul.f32 %v916, %v875
  %920 = vset.pattern.permute.xlu0 1
  %921 = vperm.xlu0 %920, %v870
  %v922 = vpop.permute.xlu0 %921
  %924 = vset.pattern.permute.xlu0 1
  %925 = vperm.xlu0 %924, %v875
  %v926 = vpop.permute.xlu0 %925
  %v928 = vmul.f32 %v922, %v870
  %v929 = vmul.f32 %v926, %v875
  %930 = vset.pattern.permute.xlu0 2
  %931 = vperm.xlu0 %930, %v870
  %v932 = vpop.permute.xlu0 %931
  %934 = vset.pattern.permute.xlu0 2
  %935 = vperm.xlu0 %934, %v875
  %v936 = vpop.permute.xlu0 %935
  %v938 = vmul.f32 %v932, %v870
  %v939 = vmul.f32 %v936, %v875
  %942 = vrot.lane.b32.xlu0 %v888, 125
  %v943 = vpop.permute.xlu0 %942
  %944 = vrot.lane.b32.xlu0 %v889, 125
  %v945 = vpop.permute.xlu0 %944
  %950 = vrot.lane.b32.xlu0 %v908, 3
  %v951 = vpop.permute.xlu0 %950
  %952 = vrot.lane.b32.xlu0 %v909, 3
  %v953 = vpop.permute.xlu0 %952
  %958 = vrot.lane.b32.xlu0 %v918, 6
  %v959 = vpop.permute.xlu0 %958
  %960 = vrot.lane.b32.xlu0 %v919, 6
  %v961 = vpop.permute.xlu0 %960
  %966 = vrot.lane.b32.xlu0 %v928, 9
  %v967 = vpop.permute.xlu0 %966
  %968 = vrot.lane.b32.xlu0 %v929, 9
  %v969 = vpop.permute.xlu0 %968
  %974 = vrot.lane.b32.xlu0 %v938, 12
  %v975 = vpop.permute.xlu0 %974
  %976 = vrot.lane.b32.xlu0 %v939, 12
  %v977 = vpop.permute.xlu0 %976
  %v980 = vsel %vm39, %v943, %v898
  %v981 = vsel %vm39, %v945, %v899
  %v982 = vsel %vm230, %v980, %v951
  %v983 = vsel %vm230, %v981, %v953
  %v984 = vsel %vm233, %v982, %v959
  %v985 = vsel %vm233, %v983, %v961
  %v986 = vsel %vm236, %v984, %v967
  %v987 = vsel %vm236, %v985, %v969
  %v988 = vsel %vm239, %v986, %v975
  %v989 = vsel %vm239, %v987, %v977
  %990 = vmatprep.subr.mxu0 0.0
  %991 = vmatpush1.msra.mxu0 %v988
  %992 = vmatprep.subr.mxu0 0.0
  %993 = vmatpush1.msra.mxu0 %v989
  %994 = vmatprep.subr.mxu0 0.0
  %995 = vmatpush1.msra.mxu0 0.0
  %996 = vmatprep.subr.mxu0 0.0
  %997 = vmatpush1.msra.mxu0 0.0
  %998 = vmatprep.subr.mxu0 0.0
  %999 = vmatpush1.msra.mxu0 0.0
  %1000 = vmatprep.subr.mxu0 0.0
  %1001 = vmatpush1.msra.mxu0 0.0
  %1002 = vmatprep.subr.mxu0 0.0
  %1003 = vmatpush1.msra.mxu0 0.0
  %1004 = vmatprep.subr.mxu0 0.0
  %1005 = vmatpush1.msra.mxu0 0.0
  %1006 = vmatprep.subr.mxu0 0.0
  %1007 = vmatpush1.msra.mxu0 0.0
  %1008 = vmatprep.subr.mxu0 0.0
  %1009 = vmatpush1.msra.mxu0 0.0
  %1010 = vmatprep.subr.mxu0 0.0
  %1011 = vmatpush1.msra.mxu0 0.0
  %1012 = vmatprep.subr.mxu0 0.0
  %1013 = vmatpush1.msra.mxu0 0.0
  %1014 = vmatprep.subr.mxu0 0.0
  %1015 = vmatpush1.msra.mxu0 0.0
  %1016 = vmatprep.subr.mxu0 0.0
  %1017 = vmatpush1.msra.mxu0 0.0
  %1018 = vmatprep.subr.mxu0 0.0
  %1019 = vmatpush1.msra.mxu0 0.0
  %1020 = vmatprep.subr.mxu0 0.0
  %1021 = vmatpush1.msra.mxu0 0.0
  %1022 = vmatprep.subr.mxu0 0.0
  %1023 = vmatpush1.msra.mxu0 0.0
  %1024 = vmatprep.subr.mxu0 0.0
  %1025 = vmatpush1.msra.mxu0 0.0
  %1026 = vmatprep.subr.mxu0 0.0
  %1027 = vmatpush1.msra.mxu0 0.0
  %1028 = vmatprep.subr.mxu0 0.0
  %1029 = vmatpush1.msra.mxu0 0.0
  %1030 = vmatprep.subr.mxu0 0.0
  %1031 = vmatpush1.msra.mxu0 0.0
  %1032 = vmatprep.subr.mxu0 0.0
  %1033 = vmatpush1.msra.mxu0 0.0
  %1034 = vmatprep.subr.mxu0 0.0
  %1035 = vmatpush1.msra.mxu0 0.0
  %1036 = vmatprep.subr.mxu0 0.0
  %1037 = vmatpush1.msra.mxu0 0.0
  %1038 = vmatprep.subr.mxu0 0.0
  %1039 = vmatpush1.msra.mxu0 0.0
  %1040 = vmatprep.subr.mxu0 0.0
  %1041 = vmatpush1.msra.mxu0 0.0
  %1042 = vmatprep.subr.mxu0 0.0
  %1043 = vmatpush1.msra.mxu0 0.0
  %1044 = vmatprep.subr.mxu0 0.0
  %1045 = vmatpush1.msra.mxu0 0.0
  %1046 = vmatprep.subr.mxu0 0.0
  %1047 = vmatpush1.msra.mxu0 0.0
  %1048 = vmatprep.subr.mxu0 0.0
  %1049 = vmatpush1.msra.mxu0 0.0
  %1050 = vmatprep.subr.mxu0 0.0
  %1051 = vmatpush1.msra.mxu0 0.0
  %1052 = vmatprep.subr.mxu0 0.0
  %1053 = vmatpush1.msra.mxu0 0.0
  %1054 = vmatprep.mubr.f32.mxu0 0.0
  %1055 = vmatmul.mubr.f32.gmra.mrb[0].mxu0 %v246
  %v1056 = vpop.f32.mrb[0].mxu0
  %v1057 = vadd.f32 0.0, %v1056
  %v1058 = vpop.f32.mrb[0].mxu0
  %1059 = vmatprep.mubr.f32.mxu0 0.0
  %1060 = vmatmul.mubr.f32.gmra.mrb[0].mxu0 %v248
  %v1061 = vpop.f32.mrb[0].mxu0
  %v1062 = vadd.f32 0.0, %v1061
  %v1063 = vpop.f32.mrb[0].mxu0
  %1064 = vdwg.mxu0
  %v1065 = vmul.f32 %v881, %v1057
  %v1066 = vmul.f32 %v886, %v1062
  %v1067 = vmul.f32 %v892, %v1057
  %v1068 = vmul.f32 %v896, %v1062
  %1071 = vrot.lane.b32.xlu0 %v1067, 125
  %v1072 = vpop.permute.xlu0 %1071
  %1073 = vrot.lane.b32.xlu0 %v1068, 125
  %v1074 = vpop.permute.xlu0 %1073
  %v1077 = vadd.f32 %v1065, %v1072
  %v1078 = vadd.f32 %v1066, %v1074
  %v1079 = vmul.f32 %v902, %v1057
  %v1080 = vmul.f32 %v906, %v1062
  %1083 = vrot.lane.b32.xlu0 %v1079, 122
  %v1084 = vpop.permute.xlu0 %1083
  %1085 = vrot.lane.b32.xlu0 %v1080, 122
  %v1086 = vpop.permute.xlu0 %1085
  %v1089 = vadd.f32 %v1077, %v1084
  %v1090 = vadd.f32 %v1078, %v1086
  %v1091 = vmul.f32 %v912, %v1057
  %v1092 = vmul.f32 %v916, %v1062
  %1095 = vrot.lane.b32.xlu0 %v1091, 119
  %v1096 = vpop.permute.xlu0 %1095
  %1097 = vrot.lane.b32.xlu0 %v1092, 119
  %v1098 = vpop.permute.xlu0 %1097
  %v1101 = vsub.f32 %v1089, %v1096
  %v1102 = vsub.f32 %v1090, %v1098
  %v1103 = vmul.f32 %v922, %v1057
  %v1104 = vmul.f32 %v926, %v1062
  %1107 = vrot.lane.b32.xlu0 %v1103, 116
  %v1108 = vpop.permute.xlu0 %1107
  %1109 = vrot.lane.b32.xlu0 %v1104, 116
  %v1110 = vpop.permute.xlu0 %1109
  %v1113 = vsub.f32 %v1101, %v1108
  %v1114 = vsub.f32 %v1102, %v1110
  %v1115 = vmul.f32 %v932, %v1057
  %v1116 = vmul.f32 %v936, %v1062
  %1119 = vrot.lane.b32.xlu0 %v1115, 113
  %v1120 = vpop.permute.xlu0 %1119
  %1121 = vrot.lane.b32.xlu0 %v1116, 113
  %v1122 = vpop.permute.xlu0 %1121
  %v1125 = vsub.f32 %v1113, %v1120
  %v1126 = vsub.f32 %v1114, %v1122
  %v1127 = vmul.f32 %v1125, -2.0
  %v1128 = vmul.f32 %v1126, -2.0
  %1129 = vset.pattern.permute.xlu0 36
  %1130 = vperm.xlu0 %1129, %v14
  %v1131 = vpop.permute.xlu0 %1130
  %1133 = vset.pattern.permute.xlu0 36
  %1134 = vperm.xlu0 %1133, %v15
  %v1135 = vpop.permute.xlu0 %1134
  %v1137 = vmul.f32 %v1127, %v1131
  %v1138 = vmul.f32 %v1128, %v1135
  %vm1139 = vcmask 261120
  %v1140 = vsel %vm1139, %v14, 0
  %v1142 = vsel %vm1139, %v15, 0
  %1144 = vmatprep.subr.mxu0 0.0
  %1145 = vmatpush1.msra.mxu0 %v16
  %1146 = vmatprep.subr.mxu0 0.0
  %1147 = vmatpush1.msra.mxu0 %v18
  %1148 = vmatprep.subr.mxu0 0.0
  %1149 = vmatpush1.msra.mxu0 %v20
  %1150 = vmatprep.subr.mxu0 0.0
  %1151 = vmatpush1.msra.mxu0 %v22
  %1152 = vmatprep.subr.mxu0 0.0
  %1153 = vmatpush1.msra.mxu0 0.0
  %1154 = vmatprep.subr.mxu0 0.0
  %1155 = vmatpush1.msra.mxu0 0.0
  %1156 = vmatprep.subr.mxu0 0.0
  %1157 = vmatpush1.msra.mxu0 0.0
  %1158 = vmatprep.subr.mxu0 0.0
  %1159 = vmatpush1.msra.mxu0 0.0
  %1160 = vmatprep.subr.mxu0 0.0
  %1161 = vmatpush1.msra.mxu0 0.0
  %1162 = vmatprep.subr.mxu0 0.0
  %1163 = vmatpush1.msra.mxu0 0.0
  %1164 = vmatprep.subr.mxu0 0.0
  %1165 = vmatpush1.msra.mxu0 0.0
  %1166 = vmatprep.subr.mxu0 0.0
  %1167 = vmatpush1.msra.mxu0 0.0
  %1168 = vmatprep.subr.mxu0 0.0
  %1169 = vmatpush1.msra.mxu0 0.0
  %1170 = vmatprep.subr.mxu0 0.0
  %1171 = vmatpush1.msra.mxu0 0.0
  %1172 = vmatprep.subr.mxu0 0.0
  %1173 = vmatpush1.msra.mxu0 0.0
  %1174 = vmatprep.subr.mxu0 0.0
  %1175 = vmatpush1.msra.mxu0 0.0
  %1176 = vmatprep.subr.mxu0 0.0
  %1177 = vmatpush1.msra.mxu0 0.0
  %1178 = vmatprep.subr.mxu0 0.0
  %1179 = vmatpush1.msra.mxu0 0.0
  %1180 = vmatprep.subr.mxu0 0.0
  %1181 = vmatpush1.msra.mxu0 0.0
  %1182 = vmatprep.subr.mxu0 0.0
  %1183 = vmatpush1.msra.mxu0 0.0
  %1184 = vmatprep.subr.mxu0 0.0
  %1185 = vmatpush1.msra.mxu0 0.0
  %1186 = vmatprep.subr.mxu0 0.0
  %1187 = vmatpush1.msra.mxu0 0.0
  %1188 = vmatprep.subr.mxu0 0.0
  %1189 = vmatpush1.msra.mxu0 0.0
  %1190 = vmatprep.subr.mxu0 0.0
  %1191 = vmatpush1.msra.mxu0 0.0
  %1192 = vmatprep.subr.mxu0 0.0
  %1193 = vmatpush1.msra.mxu0 0.0
  %1194 = vmatprep.subr.mxu0 0.0
  %1195 = vmatpush1.msra.mxu0 0.0
  %1196 = vmatprep.subr.mxu0 0.0
  %1197 = vmatpush1.msra.mxu0 0.0
  %1198 = vmatprep.subr.mxu0 0.0
  %1199 = vmatpush1.msra.mxu0 0.0
  %1200 = vmatprep.subr.mxu0 0.0
  %1201 = vmatpush1.msra.mxu0 0.0
  %1202 = vmatprep.subr.mxu0 0.0
  %1203 = vmatpush1.msra.mxu0 0.0
  %1204 = vmatprep.subr.mxu0 0.0
  %1205 = vmatpush1.msra.mxu0 0.0
  %1206 = vmatprep.subr.mxu0 0.0
  %1207 = vmatpush1.msra.mxu0 0.0
  %1208 = vmatprep.mubr.f32.mxu0 0.0
  %1209 = vmatmul.mubr.f32.gmra.mrb[0].mxu0 %v1140
  %v1210 = vpop.f32.mrb[0].mxu0
  %v1211 = vadd.f32 0.0, %v1210
  %v1212 = vpop.f32.mrb[0].mxu0
  %1213 = vmatprep.mubr.f32.mxu0 0.0
  %1214 = vmatmul.mubr.f32.gmra.mrb[0].mxu0 %v1142
  %v1215 = vpop.f32.mrb[0].mxu0
  %v1216 = vadd.f32 0.0, %v1215
  %v1217 = vpop.f32.mrb[0].mxu0
  %1218 = vdwg.mxu0
  %1219 = vmatprep.subr.mxu0 0.0
  %1220 = vmatpush1.msra.mxu0 %v28
  %1221 = vmatprep.subr.mxu0 0.0
  %1222 = vmatpush1.msra.mxu0 %v30
  %1223 = vmatprep.subr.mxu0 0.0
  %1224 = vmatpush1.msra.mxu0 0.0
  %1225 = vmatprep.subr.mxu0 0.0
  %1226 = vmatpush1.msra.mxu0 0.0
  %1227 = vmatprep.subr.mxu0 0.0
  %1228 = vmatpush1.msra.mxu0 0.0
  %1229 = vmatprep.subr.mxu0 0.0
  %1230 = vmatpush1.msra.mxu0 0.0
  %1231 = vmatprep.subr.mxu0 0.0
  %1232 = vmatpush1.msra.mxu0 0.0
  %1233 = vmatprep.subr.mxu0 0.0
  %1234 = vmatpush1.msra.mxu0 0.0
  %1235 = vmatprep.subr.mxu0 0.0
  %1236 = vmatpush1.msra.mxu0 0.0
  %1237 = vmatprep.subr.mxu0 0.0
  %1238 = vmatpush1.msra.mxu0 0.0
  %1239 = vmatprep.subr.mxu0 0.0
  %1240 = vmatpush1.msra.mxu0 0.0
  %1241 = vmatprep.subr.mxu0 0.0
  %1242 = vmatpush1.msra.mxu0 0.0
  %1243 = vmatprep.subr.mxu0 0.0
  %1244 = vmatpush1.msra.mxu0 0.0
  %1245 = vmatprep.subr.mxu0 0.0
  %1246 = vmatpush1.msra.mxu0 0.0
  %1247 = vmatprep.subr.mxu0 0.0
  %1248 = vmatpush1.msra.mxu0 0.0
  %1249 = vmatprep.subr.mxu0 0.0
  %1250 = vmatpush1.msra.mxu0 0.0
  %1251 = vmatprep.subr.mxu0 0.0
  %1252 = vmatpush1.msra.mxu0 0.0
  %1253 = vmatprep.subr.mxu0 0.0
  %1254 = vmatpush1.msra.mxu0 0.0
  %1255 = vmatprep.subr.mxu0 0.0
  %1256 = vmatpush1.msra.mxu0 0.0
  %1257 = vmatprep.subr.mxu0 0.0
  %1258 = vmatpush1.msra.mxu0 0.0
  %1259 = vmatprep.subr.mxu0 0.0
  %1260 = vmatpush1.msra.mxu0 0.0
  %1261 = vmatprep.subr.mxu0 0.0
  %1262 = vmatpush1.msra.mxu0 0.0
  %1263 = vmatprep.subr.mxu0 0.0
  %1264 = vmatpush1.msra.mxu0 0.0
  %1265 = vmatprep.subr.mxu0 0.0
  %1266 = vmatpush1.msra.mxu0 0.0
  %1267 = vmatprep.subr.mxu0 0.0
  %1268 = vmatpush1.msra.mxu0 0.0
  %1269 = vmatprep.subr.mxu0 0.0
  %1270 = vmatpush1.msra.mxu0 0.0
  %1271 = vmatprep.subr.mxu0 0.0
  %1272 = vmatpush1.msra.mxu0 0.0
  %1273 = vmatprep.subr.mxu0 0.0
  %1274 = vmatpush1.msra.mxu0 0.0
  %1275 = vmatprep.subr.mxu0 0.0
  %1276 = vmatpush1.msra.mxu0 0.0
  %1277 = vmatprep.subr.mxu0 0.0
  %1278 = vmatpush1.msra.mxu0 0.0
  %1279 = vmatprep.subr.mxu0 0.0
  %1280 = vmatpush1.msra.mxu0 0.0
  %1281 = vmatprep.subr.mxu0 0.0
  %1282 = vmatpush1.msra.mxu0 0.0
  %1283 = vmatprep.mubr.f32.mxu0 0.0
  %1284 = vmatmul.mubr.f32.gmra.mrb[0].mxu0 %v47
  %v1285 = vpop.f32.mrb[0].mxu0
  %v1286 = vadd.f32 0.0, %v1285
  %v1287 = vpop.f32.mrb[0].mxu0
  %1288 = vmatprep.mubr.f32.mxu0 0.0
  %1289 = vmatmul.mubr.f32.gmra.mrb[0].mxu0 %v49
  %v1290 = vpop.f32.mrb[0].mxu0
  %v1291 = vadd.f32 0.0, %v1290
  %v1292 = vpop.f32.mrb[0].mxu0
  %1293 = vdwg.mxu0
  %v1294 = vmul.f32 %v1286, %v1286
  %v1295 = vmul.f32 %v1291, %v1291
  %v1296 = vsel %vm39, %v1294, 0.0
  %1297 = vadd.xlane.f32.xlu0 %v1296
  %v1298 = vpop.xlane.xlu0 %1297
  %v1299 = vsel %vm39, %v1295, 0.0
  %1300 = vadd.xlane.f32.xlu0 %v1299
  %v1301 = vpop.xlane.xlu0 %1300
  %v1302 = vsub.f32 0.0, %v1298
  %v1303 = vsub.f32 0.0, %v1301
  %v1304 = vmul.f32 %v1302, 1.442695
  %v1305 = vpow.pop %v1304
  %v1306 = vmul.f32 %v1303, 1.442695
  %v1307 = vpow.pop %v1306
  %1310 = vrot.lane.b32.xlu0 %v1211, 96
  %v1311 = vpop.permute.xlu0 %1310
  %1312 = vrot.lane.b32.xlu0 %v1216, 96
  %v1313 = vpop.permute.xlu0 %1312
  %v1316 = vsel %vm1139, %v1311, %v14
  %v1317 = vsel %vm1139, %v1313, %v15
  %vm1318 = vcmask 285696
  %v1319 = vsel %vm1318, %v1316, 1.0
  %v1320 = vsel %vm1318, %v1317, 1.0
  %v1321 = vmul.f32 %v1319, %v1305
  %v1322 = vmul.f32 %v1320, %v1307
  %1323 = vrot.lane.b32.xlu0 %v14, 80
  %v1324 = vpop.permute.xlu0 %1323
  %1325 = vrot.lane.b32.xlu0 %v15, 80
  %v1326 = vpop.permute.xlu0 %1325
  %v1327 = vsel %vm46, %v1324, 0
  %v1329 = vsel %vm46, %v1326, 0
  %1331 = vmatprep.subr.mxu0 0.0
  %1332 = vmatpush1.msra.mxu0 %v1321
  %1333 = vmatprep.subr.mxu0 0.0
  %1334 = vmatpush1.msra.mxu0 %v1322
  %1335 = vmatprep.subr.mxu0 0.0
  %1336 = vmatpush1.msra.mxu0 0.0
  %1337 = vmatprep.subr.mxu0 0.0
  %1338 = vmatpush1.msra.mxu0 0.0
  %1339 = vmatprep.subr.mxu0 0.0
  %1340 = vmatpush1.msra.mxu0 0.0
  %1341 = vmatprep.subr.mxu0 0.0
  %1342 = vmatpush1.msra.mxu0 0.0
  %1343 = vmatprep.subr.mxu0 0.0
  %1344 = vmatpush1.msra.mxu0 0.0
  %1345 = vmatprep.subr.mxu0 0.0
  %1346 = vmatpush1.msra.mxu0 0.0
  %1347 = vmatprep.subr.mxu0 0.0
  %1348 = vmatpush1.msra.mxu0 0.0
  %1349 = vmatprep.subr.mxu0 0.0
  %1350 = vmatpush1.msra.mxu0 0.0
  %1351 = vmatprep.subr.mxu0 0.0
  %1352 = vmatpush1.msra.mxu0 0.0
  %1353 = vmatprep.subr.mxu0 0.0
  %1354 = vmatpush1.msra.mxu0 0.0
  %1355 = vmatprep.subr.mxu0 0.0
  %1356 = vmatpush1.msra.mxu0 0.0
  %1357 = vmatprep.subr.mxu0 0.0
  %1358 = vmatpush1.msra.mxu0 0.0
  %1359 = vmatprep.subr.mxu0 0.0
  %1360 = vmatpush1.msra.mxu0 0.0
  %1361 = vmatprep.subr.mxu0 0.0
  %1362 = vmatpush1.msra.mxu0 0.0
  %1363 = vmatprep.subr.mxu0 0.0
  %1364 = vmatpush1.msra.mxu0 0.0
  %1365 = vmatprep.subr.mxu0 0.0
  %1366 = vmatpush1.msra.mxu0 0.0
  %1367 = vmatprep.subr.mxu0 0.0
  %1368 = vmatpush1.msra.mxu0 0.0
  %1369 = vmatprep.subr.mxu0 0.0
  %1370 = vmatpush1.msra.mxu0 0.0
  %1371 = vmatprep.subr.mxu0 0.0
  %1372 = vmatpush1.msra.mxu0 0.0
  %1373 = vmatprep.subr.mxu0 0.0
  %1374 = vmatpush1.msra.mxu0 0.0
  %1375 = vmatprep.subr.mxu0 0.0
  %1376 = vmatpush1.msra.mxu0 0.0
  %1377 = vmatprep.subr.mxu0 0.0
  %1378 = vmatpush1.msra.mxu0 0.0
  %1379 = vmatprep.subr.mxu0 0.0
  %1380 = vmatpush1.msra.mxu0 0.0
  %1381 = vmatprep.subr.mxu0 0.0
  %1382 = vmatpush1.msra.mxu0 0.0
  %1383 = vmatprep.subr.mxu0 0.0
  %1384 = vmatpush1.msra.mxu0 0.0
  %1385 = vmatprep.subr.mxu0 0.0
  %1386 = vmatpush1.msra.mxu0 0.0
  %1387 = vmatprep.subr.mxu0 0.0
  %1388 = vmatpush1.msra.mxu0 0.0
  %1389 = vmatprep.subr.mxu0 0.0
  %1390 = vmatpush1.msra.mxu0 0.0
  %1391 = vmatprep.subr.mxu0 0.0
  %1392 = vmatpush1.msra.mxu0 0.0
  %1393 = vmatprep.subr.mxu0 0.0
  %1394 = vmatpush1.msra.mxu0 0.0
  %1395 = vmatprep.mubr.f32.mxu0 0.0
  %1396 = vmatmul.mubr.f32.gmra.mrb[0].mxu0 %v1327
  %v1397 = vpop.f32.mrb[0].mxu0
  %v1398 = vadd.f32 0.0, %v1397
  %v1399 = vpop.f32.mrb[0].mxu0
  %1400 = vmatprep.mubr.f32.mxu0 0.0
  %1401 = vmatmul.mubr.f32.gmra.mrb[0].mxu0 %v1329
  %v1402 = vpop.f32.mrb[0].mxu0
  %v1403 = vadd.f32 0.0, %v1402
  %v1404 = vpop.f32.mrb[0].mxu0
  %1405 = vdwg.mxu0
  %v1406 = vadd.f32 %v1211, %v1398
  %v1407 = vadd.f32 %v1216, %v1403
  %v1408 = vlaneseq
  %v1409 = vshrl.u32 %v1408, 7
  %v1410 = vsub.s32 0, %v1409
  %v1411 = vrot.slane %v24, %v1410
  %v1412 = vadd.f32 %v1406, %v1411
  %v1413 = vadd.f32 %v1407, %v1411
  %v1414 = vxor.u32 %v1412, 2147483648
  %v1415 = vxor.u32 %v1413, 2147483648
  %v1416 = vmul.f32 %v1414, 1.442695
  %v1417 = vpow.pop %v1416
  %v1418 = vmul.f32 %v1415, 1.442695
  %v1419 = vpow.pop %v1418
  %v1420 = vadd.f32 %v1417, 1.0
  %v1421 = vadd.f32 %v1419, 1.0
  %v1422 = vrcp.pop %v1420
  %v1423 = vmul.f32 1.0, %v1422
  %v1424 = vrcp.pop %v1421
  %v1425 = vmul.f32 1.0, %v1424
  %v1426 = vmul.f32 %v1412, %v1423
  %v1427 = vmul.f32 %v1413, %v1425
  %1428 = vrot.lane.b32.xlu0 %v791, 96
  %v1429 = vpop.permute.xlu0 %1428
  %1430 = vrot.lane.b32.xlu0 %v792, 96
  %v1431 = vpop.permute.xlu0 %1430
  %1434 = vmatprep.subr.mxu0 0.0
  %1435 = vmatpush1.msra.mxu0 %v1429
  %1436 = vmatprep.subr.mxu0 0.0
  %1437 = vmatpush1.msra.mxu0 %v1431
  %1438 = vmatprep.subr.mxu0 0.0
  %1439 = vmatpush1.msra.mxu0 0.0
  %1440 = vmatprep.subr.mxu0 0.0
  %1441 = vmatpush1.msra.mxu0 0.0
  %1442 = vmatprep.subr.mxu0 0.0
  %1443 = vmatpush1.msra.mxu0 0.0
  %1444 = vmatprep.subr.mxu0 0.0
  %1445 = vmatpush1.msra.mxu0 0.0
  %1446 = vmatprep.subr.mxu0 0.0
  %1447 = vmatpush1.msra.mxu0 0.0
  %1448 = vmatprep.subr.mxu0 0.0
  %1449 = vmatpush1.msra.mxu0 0.0
  %1450 = vmatprep.subr.mxu0 0.0
  %1451 = vmatpush1.msra.mxu0 0.0
  %1452 = vmatprep.subr.mxu0 0.0
  %1453 = vmatpush1.msra.mxu0 0.0
  %1454 = vmatprep.subr.mxu0 0.0
  %1455 = vmatpush1.msra.mxu0 0.0
  %1456 = vmatprep.subr.mxu0 0.0
  %1457 = vmatpush1.msra.mxu0 0.0
  %1458 = vmatprep.subr.mxu0 0.0
  %1459 = vmatpush1.msra.mxu0 0.0
  %1460 = vmatprep.subr.mxu0 0.0
  %1461 = vmatpush1.msra.mxu0 0.0
  %1462 = vmatprep.subr.mxu0 0.0
  %1463 = vmatpush1.msra.mxu0 0.0
  %1464 = vmatprep.subr.mxu0 0.0
  %1465 = vmatpush1.msra.mxu0 0.0
  %1466 = vmatprep.subr.mxu0 0.0
  %1467 = vmatpush1.msra.mxu0 0.0
  %1468 = vmatprep.subr.mxu0 0.0
  %1469 = vmatpush1.msra.mxu0 0.0
  %1470 = vmatprep.subr.mxu0 0.0
  %1471 = vmatpush1.msra.mxu0 0.0
  %1472 = vmatprep.subr.mxu0 0.0
  %1473 = vmatpush1.msra.mxu0 0.0
  %1474 = vmatprep.subr.mxu0 0.0
  %1475 = vmatpush1.msra.mxu0 0.0
  %1476 = vmatprep.subr.mxu0 0.0
  %1477 = vmatpush1.msra.mxu0 0.0
  %1478 = vmatprep.subr.mxu0 0.0
  %1479 = vmatpush1.msra.mxu0 0.0
  %1480 = vmatprep.subr.mxu0 0.0
  %1481 = vmatpush1.msra.mxu0 0.0
  %1482 = vmatprep.subr.mxu0 0.0
  %1483 = vmatpush1.msra.mxu0 0.0
  %1484 = vmatprep.subr.mxu0 0.0
  %1485 = vmatpush1.msra.mxu0 0.0
  %1486 = vmatprep.subr.mxu0 0.0
  %1487 = vmatpush1.msra.mxu0 0.0
  %1488 = vmatprep.subr.mxu0 0.0
  %1489 = vmatpush1.msra.mxu0 0.0
  %1490 = vmatprep.subr.mxu0 0.0
  %1491 = vmatpush1.msra.mxu0 0.0
  %1492 = vmatprep.subr.mxu0 0.0
  %1493 = vmatpush1.msra.mxu0 0.0
  %1494 = vmatprep.subr.mxu0 0.0
  %1495 = vmatpush1.msra.mxu0 0.0
  %1496 = vmatprep.subr.mxu0 0.0
  %1497 = vmatpush1.msra.mxu0 0.0
  %1498 = vmatprep.mubr.f32.mxu0 0.0
  %1499 = vmatmul.mubr.f32.gmra.mrb[0].mxu0 %v47
  %v1500 = vpop.f32.mrb[0].mxu0
  %v1501 = vadd.f32 0.0, %v1500
  %v1502 = vpop.f32.mrb[0].mxu0
  %1503 = vmatprep.mubr.f32.mxu0 0.0
  %1504 = vmatmul.mubr.f32.gmra.mrb[0].mxu0 %v49
  %v1505 = vpop.f32.mrb[0].mxu0
  %v1506 = vadd.f32 0.0, %v1505
  %v1507 = vpop.f32.mrb[0].mxu0
  %1508 = vdwg.mxu0
  %v1509 = vmul.f32 %v1501, %v1501
  %v1510 = vmul.f32 %v1506, %v1506
  %v1511 = vsel %vm39, %v1509, 0.0
  %1512 = vadd.xlane.f32.xlu0 %v1511
  %v1513 = vpop.xlane.xlu0 %1512
  %v1514 = vsel %vm39, %v1510, 0.0
  %1515 = vadd.xlane.f32.xlu0 %v1514
  %v1516 = vpop.xlane.xlu0 %1515
  %v1517 = vsub.f32 0.0, %v1513
  %v1518 = vsub.f32 0.0, %v1516
  %v1519 = vmul.f32 %v1517, 1.442695
  %v1520 = vpow.pop %v1519
  %v1521 = vmul.f32 %v1518, 1.442695
  %v1522 = vpow.pop %v1521
  %v1523 = vsel %vm1139, %v1311, %v791
  %v1524 = vsel %vm1139, %v1313, %v792
  %v1525 = vsel %vm1318, %v1523, 1.0
  %v1526 = vsel %vm1318, %v1524, 1.0
  %v1527 = vmul.f32 %v1525, %v1520
  %v1528 = vmul.f32 %v1526, %v1522
  %1529 = vmatprep.subr.mxu0 0.0
  %1530 = vmatpush1.msra.mxu0 %v1527
  %1531 = vmatprep.subr.mxu0 0.0
  %1532 = vmatpush1.msra.mxu0 %v1528
  %1533 = vmatprep.subr.mxu0 0.0
  %1534 = vmatpush1.msra.mxu0 0.0
  %1535 = vmatprep.subr.mxu0 0.0
  %1536 = vmatpush1.msra.mxu0 0.0
  %1537 = vmatprep.subr.mxu0 0.0
  %1538 = vmatpush1.msra.mxu0 0.0
  %1539 = vmatprep.subr.mxu0 0.0
  %1540 = vmatpush1.msra.mxu0 0.0
  %1541 = vmatprep.subr.mxu0 0.0
  %1542 = vmatpush1.msra.mxu0 0.0
  %1543 = vmatprep.subr.mxu0 0.0
  %1544 = vmatpush1.msra.mxu0 0.0
  %1545 = vmatprep.subr.mxu0 0.0
  %1546 = vmatpush1.msra.mxu0 0.0
  %1547 = vmatprep.subr.mxu0 0.0
  %1548 = vmatpush1.msra.mxu0 0.0
  %1549 = vmatprep.subr.mxu0 0.0
  %1550 = vmatpush1.msra.mxu0 0.0
  %1551 = vmatprep.subr.mxu0 0.0
  %1552 = vmatpush1.msra.mxu0 0.0
  %1553 = vmatprep.subr.mxu0 0.0
  %1554 = vmatpush1.msra.mxu0 0.0
  %1555 = vmatprep.subr.mxu0 0.0
  %1556 = vmatpush1.msra.mxu0 0.0
  %1557 = vmatprep.subr.mxu0 0.0
  %1558 = vmatpush1.msra.mxu0 0.0
  %1559 = vmatprep.subr.mxu0 0.0
  %1560 = vmatpush1.msra.mxu0 0.0
  %1561 = vmatprep.subr.mxu0 0.0
  %1562 = vmatpush1.msra.mxu0 0.0
  %1563 = vmatprep.subr.mxu0 0.0
  %1564 = vmatpush1.msra.mxu0 0.0
  %1565 = vmatprep.subr.mxu0 0.0
  %1566 = vmatpush1.msra.mxu0 0.0
  %1567 = vmatprep.subr.mxu0 0.0
  %1568 = vmatpush1.msra.mxu0 0.0
  %1569 = vmatprep.subr.mxu0 0.0
  %1570 = vmatpush1.msra.mxu0 0.0
  %1571 = vmatprep.subr.mxu0 0.0
  %1572 = vmatpush1.msra.mxu0 0.0
  %1573 = vmatprep.subr.mxu0 0.0
  %1574 = vmatpush1.msra.mxu0 0.0
  %1575 = vmatprep.subr.mxu0 0.0
  %1576 = vmatpush1.msra.mxu0 0.0
  %1577 = vmatprep.subr.mxu0 0.0
  %1578 = vmatpush1.msra.mxu0 0.0
  %1579 = vmatprep.subr.mxu0 0.0
  %1580 = vmatpush1.msra.mxu0 0.0
  %1581 = vmatprep.subr.mxu0 0.0
  %1582 = vmatpush1.msra.mxu0 0.0
  %1583 = vmatprep.subr.mxu0 0.0
  %1584 = vmatpush1.msra.mxu0 0.0
  %1585 = vmatprep.subr.mxu0 0.0
  %1586 = vmatpush1.msra.mxu0 0.0
  %1587 = vmatprep.subr.mxu0 0.0
  %1588 = vmatpush1.msra.mxu0 0.0
  %1589 = vmatprep.subr.mxu0 0.0
  %1590 = vmatpush1.msra.mxu0 0.0
  %1591 = vmatprep.subr.mxu0 0.0
  %1592 = vmatpush1.msra.mxu0 0.0
  %1593 = vmatprep.mubr.f32.mxu0 0.0
  %1594 = vmatmul.mubr.f32.gmra.mrb[0].mxu0 %v1327
  %v1595 = vpop.f32.mrb[0].mxu0
  %v1596 = vadd.f32 0.0, %v1595
  %v1597 = vpop.f32.mrb[0].mxu0
  %1598 = vmatprep.mubr.f32.mxu0 0.0
  %1599 = vmatmul.mubr.f32.gmra.mrb[0].mxu0 %v1329
  %v1600 = vpop.f32.mrb[0].mxu0
  %v1601 = vadd.f32 0.0, %v1600
  %v1602 = vpop.f32.mrb[0].mxu0
  %1603 = vdwg.mxu0
  %v1604 = vadd.f32 %v1211, %v1596
  %v1605 = vadd.f32 %v1216, %v1601
  %v1606 = vadd.f32 %v1604, %v1411
  %v1607 = vadd.f32 %v1605, %v1411
  %v1608 = vxor.u32 %v1606, 2147483648
  %v1609 = vxor.u32 %v1607, 2147483648
  %v1610 = vmul.f32 %v1608, 1.442695
  %v1611 = vpow.pop %v1610
  %v1612 = vmul.f32 %v1609, 1.442695
  %v1613 = vpow.pop %v1612
  %v1614 = vadd.f32 %v1611, 1.0
  %v1615 = vadd.f32 %v1613, 1.0
  %v1616 = vrcp.pop %v1614
  %v1617 = vmul.f32 1.0, %v1616
  %v1618 = vrcp.pop %v1615
  %v1619 = vmul.f32 1.0, %v1618
  %v1620 = vmul.f32 %v1606, %v1617
  %v1621 = vmul.f32 %v1607, %v1619
  %v1622 = vlaneseq
  %v1623 = vshrl.u32 %v1622, 7
  %v1624 = vsub.s32 1, %v1623
  %v1625 = vrot.slane %v24, %v1624
  %1627 = vrot.lane.b32.xlu0 %v1625, 96
  %v1628 = vpop.permute.xlu0 %1627
  %v1630 = vmul.f32 %v1620, %v1628
  %v1631 = vmul.f32 %v1621, %v1628
  %v1632 = vsel %vm1139, %v1630, 0.0
  %1633 = vadd.xlane.f32.xlu0 %v1632
  %v1634 = vpop.xlane.xlu0 %1633
  %v1635 = vsel %vm1139, %v1631, 0.0
  %1636 = vadd.xlane.f32.xlu0 %v1635
  %v1637 = vpop.xlane.xlu0 %1636
  %v1638 = vtanh.pop %v1634
  %v1639 = vtanh.pop %v1637
  %1641 = vset.pattern.permute.xlu0 35
  %1642 = vperm.xlu0 %1641, %v1596
  %v1643 = vpop.permute.xlu0 %1642
  %1646 = vset.pattern.permute.xlu0 35
  %1647 = vperm.xlu0 %1646, %v1601
  %v1648 = vpop.permute.xlu0 %1647
  %v1650 = vmul.f32 %v1643, %v791
  %v1651 = vmul.f32 %v1648, %v792
  %v1652 = vsub.f32 %v1596, %v1650
  %v1653 = vsub.f32 %v1601, %v1651
  %v1654 = vmul.f32 %v1638, %v1652
  %v1655 = vmul.f32 %v1639, %v1653
  %v1656 = vadd.f32 %v791, %v1654
  %v1657 = vadd.f32 %v792, %v1655
  %1662 = vrot.lane.b32.xlu0 %v16, 64
  %v1663 = vpop.permute.xlu0 %1662
  %1664 = vrot.lane.b32.xlu0 %v18, 64
  %v1665 = vpop.permute.xlu0 %1664
  %1666 = vrot.lane.b32.xlu0 %v20, 64
  %v1667 = vpop.permute.xlu0 %1666
  %1668 = vrot.lane.b32.xlu0 %v22, 64
  %v1669 = vpop.permute.xlu0 %1668
  %1675 = vrot.lane.b32.xlu0 %v1411, 96
  %v1676 = vpop.permute.xlu0 %1675
  %v1679 = vsel %vm1139, %v1426, 0
  %v1682 = vsel %vm1139, %v1427, 0
  %v1685 = vsel %vm1139, %v1620, 0
  %v1688 = vsel %vm1139, %v1621, 0
  %1690 = vmatprep.subr.mxu0 0.0
  %1691 = vmatpush1.msra.mxu0 %v1663
  %1692 = vmatprep.subr.mxu0 0.0
  %1693 = vmatpush1.msra.mxu0 %v1665
  %1694 = vmatprep.subr.mxu0 0.0
  %1695 = vmatpush1.msra.mxu0 %v1667
  %1696 = vmatprep.subr.mxu0 0.0
  %1697 = vmatpush1.msra.mxu0 %v1669
  %1698 = vmatprep.subr.mxu0 0.0
  %1699 = vmatpush1.msra.mxu0 0.0
  %1700 = vmatprep.subr.mxu0 0.0
  %1701 = vmatpush1.msra.mxu0 0.0
  %1702 = vmatprep.subr.mxu0 0.0
  %1703 = vmatpush1.msra.mxu0 0.0
  %1704 = vmatprep.subr.mxu0 0.0
  %1705 = vmatpush1.msra.mxu0 0.0
  %1706 = vmatprep.subr.mxu0 0.0
  %1707 = vmatpush1.msra.mxu0 0.0
  %1708 = vmatprep.subr.mxu0 0.0
  %1709 = vmatpush1.msra.mxu0 0.0
  %1710 = vmatprep.subr.mxu0 0.0
  %1711 = vmatpush1.msra.mxu0 0.0
  %1712 = vmatprep.subr.mxu0 0.0
  %1713 = vmatpush1.msra.mxu0 0.0
  %1714 = vmatprep.subr.mxu0 0.0
  %1715 = vmatpush1.msra.mxu0 0.0
  %1716 = vmatprep.subr.mxu0 0.0
  %1717 = vmatpush1.msra.mxu0 0.0
  %1718 = vmatprep.subr.mxu0 0.0
  %1719 = vmatpush1.msra.mxu0 0.0
  %1720 = vmatprep.subr.mxu0 0.0
  %1721 = vmatpush1.msra.mxu0 0.0
  %1722 = vmatprep.subr.mxu0 0.0
  %1723 = vmatpush1.msra.mxu0 0.0
  %1724 = vmatprep.subr.mxu0 0.0
  %1725 = vmatpush1.msra.mxu0 0.0
  %1726 = vmatprep.subr.mxu0 0.0
  %1727 = vmatpush1.msra.mxu0 0.0
  %1728 = vmatprep.subr.mxu0 0.0
  %1729 = vmatpush1.msra.mxu0 0.0
  %1730 = vmatprep.subr.mxu0 0.0
  %1731 = vmatpush1.msra.mxu0 0.0
  %1732 = vmatprep.subr.mxu0 0.0
  %1733 = vmatpush1.msra.mxu0 0.0
  %1734 = vmatprep.subr.mxu0 0.0
  %1735 = vmatpush1.msra.mxu0 0.0
  %1736 = vmatprep.subr.mxu0 0.0
  %1737 = vmatpush1.msra.mxu0 0.0
  %1738 = vmatprep.subr.mxu0 0.0
  %1739 = vmatpush1.msra.mxu0 0.0
  %1740 = vmatprep.subr.mxu0 0.0
  %1741 = vmatpush1.msra.mxu0 0.0
  %1742 = vmatprep.subr.mxu0 0.0
  %1743 = vmatpush1.msra.mxu0 0.0
  %1744 = vmatprep.subr.mxu0 0.0
  %1745 = vmatpush1.msra.mxu0 0.0
  %1746 = vmatprep.subr.mxu0 0.0
  %1747 = vmatpush1.msra.mxu0 0.0
  %1748 = vmatprep.subr.mxu0 0.0
  %1749 = vmatpush1.msra.mxu0 0.0
  %1750 = vmatprep.subr.mxu0 0.0
  %1751 = vmatpush1.msra.mxu0 0.0
  %1752 = vmatprep.subr.mxu0 0.0
  %1753 = vmatpush1.msra.mxu0 0.0
  %1754 = vmatprep.mubr.f32.mxu0 0.0
  %1755 = vmatmul.mubr.f32.gmra.mrb[0].mxu0 %v1679
  %v1756 = vpop.f32.mrb[0].mxu0
  %v1757 = vadd.f32 %v1676, %v1756
  %v1758 = vpop.f32.mrb[0].mxu0
  %1759 = vmatprep.mubr.f32.mxu0 0.0
  %1760 = vmatmul.mubr.f32.gmra.mrb[0].mxu0 %v1682
  %v1761 = vpop.f32.mrb[0].mxu0
  %v1762 = vadd.f32 %v1676, %v1761
  %v1763 = vpop.f32.mrb[0].mxu0
  %1764 = vmatprep.mubr.f32.mxu0 0.0
  %1765 = vmatmul.mubr.f32.gmra.mrb[0].mxu0 %v1685
  %v1766 = vpop.f32.mrb[0].mxu0
  %v1767 = vadd.f32 %v1676, %v1766
  %v1768 = vpop.f32.mrb[0].mxu0
  %1769 = vmatprep.mubr.f32.mxu0 0.0
  %1770 = vmatmul.mubr.f32.gmra.mrb[0].mxu0 %v1688
  %v1771 = vpop.f32.mrb[0].mxu0
  %v1772 = vadd.f32 %v1676, %v1771
  %v1773 = vpop.f32.mrb[0].mxu0
  %1774 = vdwg.mxu0
  %v1775 = vxor.u32 %v1757, 2147483648
  %v1776 = vxor.u32 %v1762, 2147483648
  %v1777 = vxor.u32 %v1767, 2147483648
  %v1778 = vxor.u32 %v1772, 2147483648
  %v1779 = vmul.f32 %v1775, 1.442695
  %v1780 = vpow.pop %v1779
  %v1781 = vmul.f32 %v1776, 1.442695
  %v1782 = vpow.pop %v1781
  %v1783 = vmul.f32 %v1777, 1.442695
  %v1784 = vpow.pop %v1783
  %v1785 = vmul.f32 %v1778, 1.442695
  %v1786 = vpow.pop %v1785
  %v1787 = vadd.f32 %v1780, 1.0
  %v1788 = vadd.f32 %v1782, 1.0
  %v1789 = vadd.f32 %v1784, 1.0
  %v1790 = vadd.f32 %v1786, 1.0
  %v1791 = vrcp.pop %v1787
  %v1792 = vmul.f32 1.0, %v1791
  %v1793 = vrcp.pop %v1788
  %v1794 = vmul.f32 1.0, %v1793
  %v1795 = vrcp.pop %v1789
  %v1796 = vmul.f32 1.0, %v1795
  %v1797 = vrcp.pop %v1790
  %v1798 = vmul.f32 1.0, %v1797
  %v1799 = vmul.f32 %v1757, %v1792
  %v1800 = vmul.f32 %v1762, %v1794
  %v1801 = vmul.f32 %v1767, %v1796
  %v1802 = vmul.f32 %v1772, %v1798
  %1803 = vrot.lane.b32.xlu0 %v16, 32
  %v1804 = vpop.permute.xlu0 %1803
  %1805 = vrot.lane.b32.xlu0 %v18, 32
  %v1806 = vpop.permute.xlu0 %1805
  %1807 = vrot.lane.b32.xlu0 %v20, 32
  %v1808 = vpop.permute.xlu0 %1807
  %1809 = vrot.lane.b32.xlu0 %v22, 32
  %v1810 = vpop.permute.xlu0 %1809
  %1815 = vrot.lane.b32.xlu0 %v1411, 64
  %v1816 = vpop.permute.xlu0 %1815
  %v1819 = vsel %vm1139, %v1799, 0
  %v1822 = vsel %vm1139, %v1800, 0
  %v1825 = vsel %vm1139, %v1801, 0
  %v1828 = vsel %vm1139, %v1802, 0
  %1830 = vmatprep.subr.mxu0 0.0
  %1831 = vmatpush1.msra.mxu0 %v1804
  %1832 = vmatprep.subr.mxu0 0.0
  %1833 = vmatpush1.msra.mxu0 %v1806
  %1834 = vmatprep.subr.mxu0 0.0
  %1835 = vmatpush1.msra.mxu0 %v1808
  %1836 = vmatprep.subr.mxu0 0.0
  %1837 = vmatpush1.msra.mxu0 %v1810
  %1838 = vmatprep.subr.mxu0 0.0
  %1839 = vmatpush1.msra.mxu0 0.0
  %1840 = vmatprep.subr.mxu0 0.0
  %1841 = vmatpush1.msra.mxu0 0.0
  %1842 = vmatprep.subr.mxu0 0.0
  %1843 = vmatpush1.msra.mxu0 0.0
  %1844 = vmatprep.subr.mxu0 0.0
  %1845 = vmatpush1.msra.mxu0 0.0
  %1846 = vmatprep.subr.mxu0 0.0
  %1847 = vmatpush1.msra.mxu0 0.0
  %1848 = vmatprep.subr.mxu0 0.0
  %1849 = vmatpush1.msra.mxu0 0.0
  %1850 = vmatprep.subr.mxu0 0.0
  %1851 = vmatpush1.msra.mxu0 0.0
  %1852 = vmatprep.subr.mxu0 0.0
  %1853 = vmatpush1.msra.mxu0 0.0
  %1854 = vmatprep.subr.mxu0 0.0
  %1855 = vmatpush1.msra.mxu0 0.0
  %1856 = vmatprep.subr.mxu0 0.0
  %1857 = vmatpush1.msra.mxu0 0.0
  %1858 = vmatprep.subr.mxu0 0.0
  %1859 = vmatpush1.msra.mxu0 0.0
  %1860 = vmatprep.subr.mxu0 0.0
  %1861 = vmatpush1.msra.mxu0 0.0
  %1862 = vmatprep.subr.mxu0 0.0
  %1863 = vmatpush1.msra.mxu0 0.0
  %1864 = vmatprep.subr.mxu0 0.0
  %1865 = vmatpush1.msra.mxu0 0.0
  %1866 = vmatprep.subr.mxu0 0.0
  %1867 = vmatpush1.msra.mxu0 0.0
  %1868 = vmatprep.subr.mxu0 0.0
  %1869 = vmatpush1.msra.mxu0 0.0
  %1870 = vmatprep.subr.mxu0 0.0
  %1871 = vmatpush1.msra.mxu0 0.0
  %1872 = vmatprep.subr.mxu0 0.0
  %1873 = vmatpush1.msra.mxu0 0.0
  %1874 = vmatprep.subr.mxu0 0.0
  %1875 = vmatpush1.msra.mxu0 0.0
  %1876 = vmatprep.subr.mxu0 0.0
  %1877 = vmatpush1.msra.mxu0 0.0
  %1878 = vmatprep.subr.mxu0 0.0
  %1879 = vmatpush1.msra.mxu0 0.0
  %1880 = vmatprep.subr.mxu0 0.0
  %1881 = vmatpush1.msra.mxu0 0.0
  %1882 = vmatprep.subr.mxu0 0.0
  %1883 = vmatpush1.msra.mxu0 0.0
  %1884 = vmatprep.subr.mxu0 0.0
  %1885 = vmatpush1.msra.mxu0 0.0
  %1886 = vmatprep.subr.mxu0 0.0
  %1887 = vmatpush1.msra.mxu0 0.0
  %1888 = vmatprep.subr.mxu0 0.0
  %1889 = vmatpush1.msra.mxu0 0.0
  %1890 = vmatprep.subr.mxu0 0.0
  %1891 = vmatpush1.msra.mxu0 0.0
  %1892 = vmatprep.subr.mxu0 0.0
  %1893 = vmatpush1.msra.mxu0 0.0
  %1894 = vmatprep.mubr.f32.mxu0 0.0
  %1895 = vmatmul.mubr.f32.gmra.mrb[0].mxu0 %v1819
  %v1896 = vpop.f32.mrb[0].mxu0
  %v1897 = vadd.f32 %v1816, %v1896
  %v1898 = vpop.f32.mrb[0].mxu0
  %1899 = vmatprep.mubr.f32.mxu0 0.0
  %1900 = vmatmul.mubr.f32.gmra.mrb[0].mxu0 %v1822
  %v1901 = vpop.f32.mrb[0].mxu0
  %v1902 = vadd.f32 %v1816, %v1901
  %v1903 = vpop.f32.mrb[0].mxu0
  %1904 = vmatprep.mubr.f32.mxu0 0.0
  %1905 = vmatmul.mubr.f32.gmra.mrb[0].mxu0 %v1825
  %v1906 = vpop.f32.mrb[0].mxu0
  %v1907 = vadd.f32 %v1816, %v1906
  %v1908 = vpop.f32.mrb[0].mxu0
  %1909 = vmatprep.mubr.f32.mxu0 0.0
  %1910 = vmatmul.mubr.f32.gmra.mrb[0].mxu0 %v1828
  %v1911 = vpop.f32.mrb[0].mxu0
  %v1912 = vadd.f32 %v1816, %v1911
  %v1913 = vpop.f32.mrb[0].mxu0
  %1914 = vdwg.mxu0
  %1917 = vrot.lane.b32.xlu0 %v1907, 32
  %v1918 = vpop.permute.xlu0 %1917
  %1919 = vrot.lane.b32.xlu0 %v1912, 32
  %v1920 = vpop.permute.xlu0 %1919
  %v1923 = vsel %vm1139, %v1897, %v1918
  %v1924 = vsel %vm1139, %v1902, %v1920
  %v1926 = vrot.slane %v24, 2
  %v1927 = vsel %vm46, %v1926, 0
  %1929 = vmatprep.subr.mxu0 0.0
  %1930 = vmatpush1.msra.mxu0 %v1923
  %1931 = vmatprep.subr.mxu0 0.0
  %1932 = vmatpush1.msra.mxu0 %v1924
  %1933 = vmatprep.subr.mxu0 0.0
  %1934 = vmatpush1.msra.mxu0 0.0
  %1935 = vmatprep.subr.mxu0 0.0
  %1936 = vmatpush1.msra.mxu0 0.0
  %1937 = vmatprep.subr.mxu0 0.0
  %1938 = vmatpush1.msra.mxu0 0.0
  %1939 = vmatprep.subr.mxu0 0.0
  %1940 = vmatpush1.msra.mxu0 0.0
  %1941 = vmatprep.subr.mxu0 0.0
  %1942 = vmatpush1.msra.mxu0 0.0
  %1943 = vmatprep.subr.mxu0 0.0
  %1944 = vmatpush1.msra.mxu0 0.0
  %1945 = vmatprep.subr.mxu0 0.0
  %1946 = vmatpush1.msra.mxu0 0.0
  %1947 = vmatprep.subr.mxu0 0.0
  %1948 = vmatpush1.msra.mxu0 0.0
  %1949 = vmatprep.subr.mxu0 0.0
  %1950 = vmatpush1.msra.mxu0 0.0
  %1951 = vmatprep.subr.mxu0 0.0
  %1952 = vmatpush1.msra.mxu0 0.0
  %1953 = vmatprep.subr.mxu0 0.0
  %1954 = vmatpush1.msra.mxu0 0.0
  %1955 = vmatprep.subr.mxu0 0.0
  %1956 = vmatpush1.msra.mxu0 0.0
  %1957 = vmatprep.subr.mxu0 0.0
  %1958 = vmatpush1.msra.mxu0 0.0
  %1959 = vmatprep.subr.mxu0 0.0
  %1960 = vmatpush1.msra.mxu0 0.0
  %1961 = vmatprep.subr.mxu0 0.0
  %1962 = vmatpush1.msra.mxu0 0.0
  %1963 = vmatprep.subr.mxu0 0.0
  %1964 = vmatpush1.msra.mxu0 0.0
  %1965 = vmatprep.subr.mxu0 0.0
  %1966 = vmatpush1.msra.mxu0 0.0
  %1967 = vmatprep.subr.mxu0 0.0
  %1968 = vmatpush1.msra.mxu0 0.0
  %1969 = vmatprep.subr.mxu0 0.0
  %1970 = vmatpush1.msra.mxu0 0.0
  %1971 = vmatprep.subr.mxu0 0.0
  %1972 = vmatpush1.msra.mxu0 0.0
  %1973 = vmatprep.subr.mxu0 0.0
  %1974 = vmatpush1.msra.mxu0 0.0
  %1975 = vmatprep.subr.mxu0 0.0
  %1976 = vmatpush1.msra.mxu0 0.0
  %1977 = vmatprep.subr.mxu0 0.0
  %1978 = vmatpush1.msra.mxu0 0.0
  %1979 = vmatprep.subr.mxu0 0.0
  %1980 = vmatpush1.msra.mxu0 0.0
  %1981 = vmatprep.subr.mxu0 0.0
  %1982 = vmatpush1.msra.mxu0 0.0
  %1983 = vmatprep.subr.mxu0 0.0
  %1984 = vmatpush1.msra.mxu0 0.0
  %1985 = vmatprep.subr.mxu0 0.0
  %1986 = vmatpush1.msra.mxu0 0.0
  %1987 = vmatprep.subr.mxu0 0.0
  %1988 = vmatpush1.msra.mxu0 0.0
  %1989 = vmatprep.subr.mxu0 0.0
  %1990 = vmatpush1.msra.mxu0 0.0
  %1991 = vmatprep.subr.mxu0 0.0
  %1992 = vmatpush1.msra.mxu0 0.0
  %1993 = vmatprep.mubr.f32.mxu0 0.0
  %1994 = vmatmul.mubr.f32.gmra.mrb[0].mxu0 %v1927
  %v1995 = vpop.f32.mrb[0].mxu0
  %v1996 = vadd.f32 0.0, %v1995
  %v1997 = vpop.f32.mrb[0].mxu0
  %1998 = vdwg.mxu0
  %2000 = vrot.lane.b32.xlu0 %v1996, 96
  %v2001 = vpop.permute.xlu0 %2000
  %2002 = vrot.lane.b32.xlu0 %v1411, 32
  %v2003 = vpop.permute.xlu0 %2002
  %v2005 = vsel %vm1139, %v2001, 0
  %2007 = vmatprep.subr.mxu0 0.0
  %2008 = vmatpush1.msra.mxu0 %v17
  %2009 = vmatprep.subr.mxu0 0.0
  %2010 = vmatpush1.msra.mxu0 %v19
  %2011 = vmatprep.subr.mxu0 0.0
  %2012 = vmatpush1.msra.mxu0 %v21
  %2013 = vmatprep.subr.mxu0 0.0
  %2014 = vmatpush1.msra.mxu0 %v23
  %2015 = vmatprep.subr.mxu0 0.0
  %2016 = vmatpush1.msra.mxu0 0.0
  %2017 = vmatprep.subr.mxu0 0.0
  %2018 = vmatpush1.msra.mxu0 0.0
  %2019 = vmatprep.subr.mxu0 0.0
  %2020 = vmatpush1.msra.mxu0 0.0
  %2021 = vmatprep.subr.mxu0 0.0
  %2022 = vmatpush1.msra.mxu0 0.0
  %2023 = vmatprep.subr.mxu0 0.0
  %2024 = vmatpush1.msra.mxu0 0.0
  %2025 = vmatprep.subr.mxu0 0.0
  %2026 = vmatpush1.msra.mxu0 0.0
  %2027 = vmatprep.subr.mxu0 0.0
  %2028 = vmatpush1.msra.mxu0 0.0
  %2029 = vmatprep.subr.mxu0 0.0
  %2030 = vmatpush1.msra.mxu0 0.0
  %2031 = vmatprep.subr.mxu0 0.0
  %2032 = vmatpush1.msra.mxu0 0.0
  %2033 = vmatprep.subr.mxu0 0.0
  %2034 = vmatpush1.msra.mxu0 0.0
  %2035 = vmatprep.subr.mxu0 0.0
  %2036 = vmatpush1.msra.mxu0 0.0
  %2037 = vmatprep.subr.mxu0 0.0
  %2038 = vmatpush1.msra.mxu0 0.0
  %2039 = vmatprep.subr.mxu0 0.0
  %2040 = vmatpush1.msra.mxu0 0.0
  %2041 = vmatprep.subr.mxu0 0.0
  %2042 = vmatpush1.msra.mxu0 0.0
  %2043 = vmatprep.subr.mxu0 0.0
  %2044 = vmatpush1.msra.mxu0 0.0
  %2045 = vmatprep.subr.mxu0 0.0
  %2046 = vmatpush1.msra.mxu0 0.0
  %2047 = vmatprep.subr.mxu0 0.0
  %2048 = vmatpush1.msra.mxu0 0.0
  %2049 = vmatprep.subr.mxu0 0.0
  %2050 = vmatpush1.msra.mxu0 0.0
  %2051 = vmatprep.subr.mxu0 0.0
  %2052 = vmatpush1.msra.mxu0 0.0
  %2053 = vmatprep.subr.mxu0 0.0
  %2054 = vmatpush1.msra.mxu0 0.0
  %2055 = vmatprep.subr.mxu0 0.0
  %2056 = vmatpush1.msra.mxu0 0.0
  %2057 = vmatprep.subr.mxu0 0.0
  %2058 = vmatpush1.msra.mxu0 0.0
  %2059 = vmatprep.subr.mxu0 0.0
  %2060 = vmatpush1.msra.mxu0 0.0
  %2061 = vmatprep.subr.mxu0 0.0
  %2062 = vmatpush1.msra.mxu0 0.0
  %2063 = vmatprep.subr.mxu0 0.0
  %2064 = vmatpush1.msra.mxu0 0.0
  %2065 = vmatprep.subr.mxu0 0.0
  %2066 = vmatpush1.msra.mxu0 0.0
  %2067 = vmatprep.subr.mxu0 0.0
  %2068 = vmatpush1.msra.mxu0 0.0
  %2069 = vmatprep.subr.mxu0 0.0
  %2070 = vmatpush1.msra.mxu0 0.0
  %2071 = vmatprep.mubr.f32.mxu0 0.0
  %2072 = vmatmul.mubr.f32.gmra.mrb[0].mxu0 %v2005
  %v2073 = vpop.f32.mrb[0].mxu0
  %v2074 = vadd.f32 %v2003, %v2073
  %v2075 = vpop.f32.mrb[0].mxu0
  %2076 = vdwg.mxu0
  %v2077 = vxor.u32 %v2074, 2147483648
  %v2078 = vmul.f32 %v2077, 1.442695
  %v2079 = vpow.pop %v2078
  %v2080 = vadd.f32 %v2079, 1.0
  %v2081 = vrcp.pop %v2080
  %v2082 = vmul.f32 1.0, %v2081
  %v2083 = vmul.f32 %v2074, %v2082
  %2084 = vrot.lane.b32.xlu0 %v1625, 64
  %v2085 = vpop.permute.xlu0 %2084
  %v2087 = vmul.f32 %v2083, %v2085
  %vm2088 = vcmask 254976
  %v2089 = vsel %vm2088, %v2087, 0.0
  %2090 = vadd.xlane.f32.xlu0 %v2089
  %v2091 = vpop.xlane.xlu0 %2090
  %v2092 = vadd.f32 %v2091, %v1625
  %v2093 = vsub.f32 %v1656, %v791
  %v2094 = vsub.f32 %v1657, %v792
  %v2095 = vmul.f32 %v2093, %v1131
  %v2096 = vmul.f32 %v2094, %v1135
  %2099 = vrot.lane.b32.xlu0 %v1137, 32
  %v2100 = vpop.permute.xlu0 %2099
  %2101 = vrot.lane.b32.xlu0 %v1138, 32
  %v2102 = vpop.permute.xlu0 %2101
  %v2105 = vsub.f32 %v2095, %v2100
  %v2106 = vsub.f32 %v2096, %v2102
  %v2107 = vmul.f32 %v2105, %v2105
  %v2108 = vmul.f32 %v2106, %v2106
  %2111 = vrot.lane.b32.xlu0 %v2107, 96
  %v2112 = vpop.permute.xlu0 %2111
  %2113 = vrot.lane.b32.xlu0 %v2108, 96
  %v2114 = vpop.permute.xlu0 %2113
  %v2117 = vsel %vm39, %v2112, 0.0
  %v2118 = vsel %vm39, %v2114, 0.0
  %v2119 = vadd.f32 %v2117, %v2118
  %2120 = vadd.xlane.f32.xlu0 %v2119
  %v2121 = vpop.xlane.xlu0 %2120
  %v2122 = vrot.slane %v2121, 4
  %v2123 = vadd.f32 %v2121, %v2122
  %v2124 = vrot.slane %v2123, 2
  %v2125 = vadd.f32 %v2123, %v2124
  %v2126 = vrot.slane %v2125, 1
  %v2127 = vadd.f32 %v2125, %v2126
  %s2128 = vtos %v2127
  %v2129 = vstv %s2128
  %v2130 = vmul.f32 %v2129, 0.5
  %2135 = vrot.lane.b32.xlu0 %v17, 96
  %v2136 = vpop.permute.xlu0 %2135
  %2137 = vrot.lane.b32.xlu0 %v19, 96
  %v2138 = vpop.permute.xlu0 %2137
  %2139 = vrot.lane.b32.xlu0 %v21, 96
  %v2140 = vpop.permute.xlu0 %2139
  %2141 = vrot.lane.b32.xlu0 %v23, 96
  %v2142 = vpop.permute.xlu0 %2141
  %2143 = vrot.lane.b32.xlu0 %v2136, 96
  %v2144 = vpop.permute.xlu0 %2143
  %2145 = vrot.lane.b32.xlu0 %v2138, 96
  %v2146 = vpop.permute.xlu0 %2145
  %2147 = vrot.lane.b32.xlu0 %v2140, 96
  %v2148 = vpop.permute.xlu0 %2147
  %2149 = vrot.lane.b32.xlu0 %v2142, 96
  %v2150 = vpop.permute.xlu0 %2149
  %vm2159 = vcmask 523264
  %v2160 = vsel %vm2159, %v1996, 0
  %2162 = vmatprep.subr.mxu0 0.0
  %2163 = vmatpush1.msra.mxu0 %v2136
  %2164 = vmatprep.subr.mxu0 0.0
  %2165 = vmatpush1.msra.mxu0 %v2138
  %2166 = vmatprep.subr.mxu0 0.0
  %2167 = vmatpush1.msra.mxu0 %v2140
  %2168 = vmatprep.subr.mxu0 0.0
  %2169 = vmatpush1.msra.mxu0 %v2142
  %2170 = vmatprep.subr.mxu0 0.0
  %2171 = vmatpush1.msra.mxu0 %v2144
  %2172 = vmatprep.subr.mxu0 0.0
  %2173 = vmatpush1.msra.mxu0 %v2146
  %2174 = vmatprep.subr.mxu0 0.0
  %2175 = vmatpush1.msra.mxu0 %v2148
  %2176 = vmatprep.subr.mxu0 0.0
  %2177 = vmatpush1.msra.mxu0 %v2150
  %2178 = vmatprep.subr.mxu0 0.0
  %2179 = vmatpush1.msra.mxu0 0.0
  %2180 = vmatprep.subr.mxu0 0.0
  %2181 = vmatpush1.msra.mxu0 0.0
  %2182 = vmatprep.subr.mxu0 0.0
  %2183 = vmatpush1.msra.mxu0 0.0
  %2184 = vmatprep.subr.mxu0 0.0
  %2185 = vmatpush1.msra.mxu0 0.0
  %2186 = vmatprep.subr.mxu0 0.0
  %2187 = vmatpush1.msra.mxu0 0.0
  %2188 = vmatprep.subr.mxu0 0.0
  %2189 = vmatpush1.msra.mxu0 0.0
  %2190 = vmatprep.subr.mxu0 0.0
  %2191 = vmatpush1.msra.mxu0 0.0
  %2192 = vmatprep.subr.mxu0 0.0
  %2193 = vmatpush1.msra.mxu0 0.0
  %2194 = vmatprep.subr.mxu0 0.0
  %2195 = vmatpush1.msra.mxu0 0.0
  %2196 = vmatprep.subr.mxu0 0.0
  %2197 = vmatpush1.msra.mxu0 0.0
  %2198 = vmatprep.subr.mxu0 0.0
  %2199 = vmatpush1.msra.mxu0 0.0
  %2200 = vmatprep.subr.mxu0 0.0
  %2201 = vmatpush1.msra.mxu0 0.0
  %2202 = vmatprep.subr.mxu0 0.0
  %2203 = vmatpush1.msra.mxu0 0.0
  %2204 = vmatprep.subr.mxu0 0.0
  %2205 = vmatpush1.msra.mxu0 0.0
  %2206 = vmatprep.subr.mxu0 0.0
  %2207 = vmatpush1.msra.mxu0 0.0
  %2208 = vmatprep.subr.mxu0 0.0
  %2209 = vmatpush1.msra.mxu0 0.0
  %2210 = vmatprep.subr.mxu0 0.0
  %2211 = vmatpush1.msra.mxu0 0.0
  %2212 = vmatprep.subr.mxu0 0.0
  %2213 = vmatpush1.msra.mxu0 0.0
  %2214 = vmatprep.subr.mxu0 0.0
  %2215 = vmatpush1.msra.mxu0 0.0
  %2216 = vmatprep.subr.mxu0 0.0
  %2217 = vmatpush1.msra.mxu0 0.0
  %2218 = vmatprep.subr.mxu0 0.0
  %2219 = vmatpush1.msra.mxu0 0.0
  %2220 = vmatprep.subr.mxu0 0.0
  %2221 = vmatpush1.msra.mxu0 0.0
  %2222 = vmatprep.subr.mxu0 0.0
  %2223 = vmatpush1.msra.mxu0 0.0
  %2224 = vmatprep.subr.mxu0 0.0
  %2225 = vmatpush1.msra.mxu0 0.0
  %2226 = vmatprep.mubr.f32.mxu0 0.0
  %2227 = vmatmul.mubr.f32.gmra.mrb[0].mxu0 %v2160
  %v2228 = vpop.f32.mrb[0].mxu0
  %v2229 = vadd.f32 %v1625, %v2228
  %v2230 = vpop.f32.mrb[0].mxu0
  %2231 = vdwg.mxu0
  %v2232 = vxor.u32 %v2229, 2147483648
  %v2233 = vmul.f32 %v2232, 1.442695
  %v2234 = vpow.pop %v2233
  %v2235 = vadd.f32 %v2234, 1.0
  %v2236 = vrcp.pop %v2235
  %v2237 = vmul.f32 1.0, %v2236
  %v2238 = vmul.f32 %v2229, %v2237
  %2239 = vrot.lane.b32.xlu0 %v17, 32
  %v2240 = vpop.permute.xlu0 %2239
  %2241 = vrot.lane.b32.xlu0 %v19, 32
  %v2242 = vpop.permute.xlu0 %2241
  %2243 = vrot.lane.b32.xlu0 %v21, 32
  %v2244 = vpop.permute.xlu0 %2243
  %2245 = vrot.lane.b32.xlu0 %v23, 32
  %v2246 = vpop.permute.xlu0 %2245
  %v2252 = vsel %vm1139, %v2238, 0
  %2254 = vmatprep.subr.mxu0 0.0
  %2255 = vmatpush1.msra.mxu0 %v2240
  %2256 = vmatprep.subr.mxu0 0.0
  %2257 = vmatpush1.msra.mxu0 %v2242
  %2258 = vmatprep.subr.mxu0 0.0
  %2259 = vmatpush1.msra.mxu0 %v2244
  %2260 = vmatprep.subr.mxu0 0.0
  %2261 = vmatpush1.msra.mxu0 %v2246
  %2262 = vmatprep.subr.mxu0 0.0
  %2263 = vmatpush1.msra.mxu0 0.0
  %2264 = vmatprep.subr.mxu0 0.0
  %2265 = vmatpush1.msra.mxu0 0.0
  %2266 = vmatprep.subr.mxu0 0.0
  %2267 = vmatpush1.msra.mxu0 0.0
  %2268 = vmatprep.subr.mxu0 0.0
  %2269 = vmatpush1.msra.mxu0 0.0
  %2270 = vmatprep.subr.mxu0 0.0
  %2271 = vmatpush1.msra.mxu0 0.0
  %2272 = vmatprep.subr.mxu0 0.0
  %2273 = vmatpush1.msra.mxu0 0.0
  %2274 = vmatprep.subr.mxu0 0.0
  %2275 = vmatpush1.msra.mxu0 0.0
  %2276 = vmatprep.subr.mxu0 0.0
  %2277 = vmatpush1.msra.mxu0 0.0
  %2278 = vmatprep.subr.mxu0 0.0
  %2279 = vmatpush1.msra.mxu0 0.0
  %2280 = vmatprep.subr.mxu0 0.0
  %2281 = vmatpush1.msra.mxu0 0.0
  %2282 = vmatprep.subr.mxu0 0.0
  %2283 = vmatpush1.msra.mxu0 0.0
  %2284 = vmatprep.subr.mxu0 0.0
  %2285 = vmatpush1.msra.mxu0 0.0
  %2286 = vmatprep.subr.mxu0 0.0
  %2287 = vmatpush1.msra.mxu0 0.0
  %2288 = vmatprep.subr.mxu0 0.0
  %2289 = vmatpush1.msra.mxu0 0.0
  %2290 = vmatprep.subr.mxu0 0.0
  %2291 = vmatpush1.msra.mxu0 0.0
  %2292 = vmatprep.subr.mxu0 0.0
  %2293 = vmatpush1.msra.mxu0 0.0
  %2294 = vmatprep.subr.mxu0 0.0
  %2295 = vmatpush1.msra.mxu0 0.0
  %2296 = vmatprep.subr.mxu0 0.0
  %2297 = vmatpush1.msra.mxu0 0.0
  %2298 = vmatprep.subr.mxu0 0.0
  %2299 = vmatpush1.msra.mxu0 0.0
  %2300 = vmatprep.subr.mxu0 0.0
  %2301 = vmatpush1.msra.mxu0 0.0
  %2302 = vmatprep.subr.mxu0 0.0
  %2303 = vmatpush1.msra.mxu0 0.0
  %2304 = vmatprep.subr.mxu0 0.0
  %2305 = vmatpush1.msra.mxu0 0.0
  %2306 = vmatprep.subr.mxu0 0.0
  %2307 = vmatpush1.msra.mxu0 0.0
  %2308 = vmatprep.subr.mxu0 0.0
  %2309 = vmatpush1.msra.mxu0 0.0
  %2310 = vmatprep.subr.mxu0 0.0
  %2311 = vmatpush1.msra.mxu0 0.0
  %2312 = vmatprep.subr.mxu0 0.0
  %2313 = vmatpush1.msra.mxu0 0.0
  %2314 = vmatprep.subr.mxu0 0.0
  %2315 = vmatpush1.msra.mxu0 0.0
  %2316 = vmatprep.subr.mxu0 0.0
  %2317 = vmatpush1.msra.mxu0 0.0
  %2318 = vmatprep.mubr.f32.mxu0 0.0
  %2319 = vmatmul.mubr.f32.gmra.mrb[0].mxu0 %v2252
  %v2320 = vpop.f32.mrb[0].mxu0
  %v2321 = vadd.f32 0.0, %v2320
  %v2322 = vpop.f32.mrb[0].mxu0
  %2323 = vdwg.mxu0
  %2324 = vrot.lane.b32.xlu0 %v1625, 31
  %v2325 = vpop.permute.xlu0 %2324
  %v2327 = vadd.f32 %v2321, %v2325
  %vm2328 = vcmask 74752
  %v2329 = vsel %vm2328, %v2327, -inf
  %2330 = vmax.xlane.f32.xlu0 %v2329
  %v2331 = vpop.xlane.xlu0 %2330
  %v2332 = vsub.f32 %v2327, %v2331
  %v2333 = vmul.f32 %v2332, 1.442695
  %v2334 = vpow.pop %v2333
  %v2335 = vsel %vm2328, %v2334, 0.0
  %2336 = vadd.xlane.f32.xlu0 %v2335
  %v2337 = vpop.xlane.xlu0 %2336
  %v2338 = vlog2.pop %v2337
  %v2339 = vmul.f32 %v2338, 0.6931472
  %v2340 = vadd.f32 %v2331, %v2339
  %v2342 = vrot.slane %v2327, 4
  %v2344 = vmul.f32 %v24, %v2342
  %vm2345 = vcmask 78852
  %v2346 = vsel %vm2345, %v2344, 0.0
  %2347 = vadd.xlane.f32.xlu0 %v2346
  %v2348 = vpop.xlane.xlu0 %2347
  %v2350 = vrot.slane %v2348, 4
  %v2352 = vsub.f32 %v2340, %v2350
  %vm2353 = vcmask 1024
  %v2354 = vsel %vm2353, %v2352, 0.0
  %2355 = vadd.xlane.f32.xlu0 %v2354
  %v2356 = vpop.xlane.xlu0 %2355
  %v2357 = vrot.slane %v2356, 4
  %v2358 = vadd.f32 %v2356, %v2357
  %v2359 = vrot.slane %v2358, 2
  %v2360 = vadd.f32 %v2358, %v2359
  %v2361 = vrot.slane %v2360, 1
  %v2362 = vadd.f32 %v2360, %v2361
  %s2363 = vtos %v2362
  %v2364 = vstv %s2363
  %v2365 = vmul.f32 %v2364, 0.5
  %v2366 = vlaneseq
  %v2367 = vand.u32 %v2366, 127
  %2369 = vrot.lane.b32.xlu0 %v2092, 32
  %v2370 = vpop.permute.xlu0 %2369
  %v2372 = vsel %vm2353, %v2370, 0.0
  %2373 = vadd.xlane.f32.xlu0 %v2372
  %v2374 = vpop.xlane.xlu0 %2373
  %v2375 = vrot.slane %v2374, 4
  %v2376 = vadd.f32 %v2374, %v2375
  %v2377 = vrot.slane %v2376, 2
  %v2378 = vadd.f32 %v2376, %v2377
  %v2379 = vrot.slane %v2378, 1
  %v2380 = vadd.f32 %v2378, %v2379
  %s2381 = vtos %v2380
  %vm2382 = vcmp.eq.s32.totalorder %v2367, 0
  %vm2383 = vcmp.eq.s32.totalorder %v2367, 1
  %vm2384 = vcmp.eq.s32.totalorder %v2367, 2
  %v2385 = vstv %s2381
  %v2386 = vsel %vm2384, %v2385, 0.0
  %v2387 = vsel %vm2383, %v2365, %v2386
  %v2388 = vsel %vm2382, %v2130, %v2387
  %2389 = vst [vmem:[%s3] sm:$0xff] %v2388
  // Predicated region
  $region14: #{forward.3} parent=0 // pred_check
    _
  $region15: #{forward.3} parent=0 // pred_check_branch
    %2391 = sbr.rel (0) target = $region17
  $region16: #{forward.3} parent=0 // pred_region
    _
  $region17: #{forward.3} parent=0 // pred_fallthru
    _
  // Predicated region
  $region18: #{forward.3} parent=0 // pred_check
    _
  $region19: #{forward.3} parent=0 // pred_check_branch
    %2393 = sbr.rel (0) target = $region21
  $region20: #{forward.3} parent=0 // pred_region
    _
  $region21: #{forward.3} parent=0 // pred_fallthru
    _

</llo_original>
